<compile_context>
chip_gen: v7x
topology: tpu7x:2x2x1
jax: 0.10.0
libtpu: 0.0.40
codegen_flags: <defaults>
</compile_context>

<pallas_src>
import jax
import jax.numpy as jnp
from jax import lax
from jax.experimental import pallas as pl
from jax.experimental.pallas import tpu as pltpu


# ------------------------------ small helpers ------------------------------ #

def _pick_tile(dim, pref, align):
    """Largest tile <= pref that is a multiple of `align` (or the full dim if tiny)."""
    if dim <= align:
        return dim                      # full dim is always a legal block
    t = min(pref, dim)
    return max(align, (t // align) * align)


def _batch_block(batch):
    """Batch block for the recurrence.  Splitting lets v7x shard the recurrence across
    its 2 TensorCores; halves must stay sublane-aligned for the bf16 hidden stores."""
    return batch // 2 if (batch % 32 == 0) else batch


def _lstm_step(gates_in, h, c, whh, hid_dim):
    """One LSTM step.  gates_in = precomputed x @ W_ih + b (f32), h/c f32, whh bf16."""
    gates = gates_in + jnp.dot(h.astype(whh.dtype), whh,
                               preferred_element_type=jnp.float32)   # [B, 4H] f32
    # TODO(synk): at non-toy sizes pad H to a multiple of 128 so these gate slices and
    # the bf16 hidden-state stores are lane-dense instead of masked sub-vreg selects.
    i = jax.nn.sigmoid(gates[:, 0 * hid_dim:1 * hid_dim])
    f = jax.nn.sigmoid(gates[:, 1 * hid_dim:2 * hid_dim])
    g = jnp.tanh(gates[:, 2 * hid_dim:3 * hid_dim])
    o = jax.nn.sigmoid(gates[:, 3 * hid_dim:4 * hid_dim])
    c_new = f * c + i * g
    h_new = o * jnp.tanh(c_new)
    return h_new, c_new


# ------------------------- batched matmul (+bias) kernel -------------------- #

def matmul_bias(x, w, b, *, zero_rows=0, out_dtype=jnp.float32,
                tm_pref=256, tn_pref=1024):
    """Tiled [M, K] @ [K, N] + [1, N] with f32 accumulation.

    Used for (a) the hoisted input projections x @ W_ih + b over all timesteps and
    (b) the output vocab projection.  `zero_rows` forces output rows < zero_rows to
    exactly 0.0 (used to produce the t=0 zeros row of the logits in place).

    Grid is (N tiles, M tiles) with M innermost so the [K, tn] weight tile is fetched
    from HBM once per N tile and reused across the whole M sweep.
    """
    M, K = x.shape
    N = w.shape[1]
    tm = _pick_tile(M, tm_pref, 8)
    tn = _pick_tile(N, tn_pref, 128)
    grid = (pl.cdiv(N, tn), pl.cdiv(M, tm))
    # TODO(synk): for very large K (H >= ~4k) add a K grid axis with an f32 acc scratch
    # (pl.when init/finalize) so the weight tile stays within v7x's 64 MiB VMEM.

    def kernel(x_ref, w_ref, b_ref, o_ref):
        acc = jnp.dot(x_ref[...], w_ref[...],
                      preferred_element_type=jnp.float32) + b_ref[...]
        if zero_rows:
            mi = pl.program_id(1)
            rows = mi * tm + lax.broadcasted_iota(jnp.int32, acc.shape, 0)
            acc = jnp.where(rows < zero_rows, 0.0, acc)
        o_ref[...] = acc.astype(o_ref.dtype)

    return pl.pallas_call(
        kernel,
        out_shape=jax.ShapeDtypeStruct((M, N), out_dtype),
        grid_spec=pltpu.PrefetchScalarGridSpec(
            num_scalar_prefetch=0,
            grid=grid,
            in_specs=[
                pl.BlockSpec((tm, K), lambda vi, mi: (mi, 0)),
                pl.BlockSpec((K, tn), lambda vi, mi: (0, vi)),   # invariant along mi
                pl.BlockSpec((1, tn), lambda vi, mi: (0, vi)),
            ],
            out_specs=pl.BlockSpec((tm, tn), lambda vi, mi: (mi, vi)),
        ),
        compiler_params=pltpu.CompilerParams(
            dimension_semantics=("parallel", "arbitrary")),
    )(x, w, b)


# ----------------------------- recurrence kernels --------------------------- #

def lstm_encoder(gates, whh, *, chunk=8):
    """Encoder recurrence over precomputed gates [Ts, B, 4H] f32 -> final (h, c) f32.

    Grid = (batch blocks ["parallel"], time chunks ["arbitrary"]).  The (h, c) outputs
    (constant block index along the chunk axis -> VMEM resident) carry the state.
    """
    T, B, G = gates.shape
    H = G // 4
    bb = _batch_block(B)
    tc = min(chunk, T)
    n_c = pl.cdiv(T, tc)
    masked = (T % tc) != 0

    def kernel(g_ref, w_ref, h_ref, c_ref):
        ci = pl.program_id(1)

        @pl.when(ci == 0)
        def _():
            h_ref[...] = jnp.zeros_like(h_ref)
            c_ref[...] = jnp.zeros_like(c_ref)

        whh_v = w_ref[...]
        h = h_ref[...]
        c = c_ref[...]
        for t in range(tc):                      # capped unroll (chunk <= 8)
            h_new, c_new = _lstm_step(g_ref[t], h, c, whh_v, H)
            if masked:
                pred = (ci * tc + t) < T
                h = jnp.where(pred, h_new, h)
                c = jnp.where(pred, c_new, c)
            else:
                h, c = h_new, c_new
        h_ref[...] = h
        c_ref[...] = c

    return pl.pallas_call(
        kernel,
        out_shape=(jax.ShapeDtypeStruct((B, H), jnp.float32),
                   jax.ShapeDtypeStruct((B, H), jnp.float32)),
        grid_spec=pltpu.PrefetchScalarGridSpec(
            num_scalar_prefetch=0,
            grid=(B // bb, n_c),
            in_specs=[
                pl.BlockSpec((tc, bb, G), lambda bi, ci: (ci, bi, 0)),
                pl.BlockSpec((H, G), lambda bi, ci: (0, 0)),
            ],
            out_specs=(pl.BlockSpec((bb, H), lambda bi, ci: (bi, 0)),
                       pl.BlockSpec((bb, H), lambda bi, ci: (bi, 0))),
        ),
        compiler_params=pltpu.CompilerParams(
            dimension_semantics=("parallel", "arbitrary")),
    )(gates, whh)


def lstm_decoder(gates, whh, h0, c0, *, chunk=8):
    """Decoder recurrence.  gates [Td, B, 4H] f32, initial state (h0, c0) f32.

    Emits hid [Tt=Td+1, B, H] bf16 with hid[0] = 0 and hid[1+t] = h_t, so the
    output projection can write the final [Tt*B, V] logits with no row offset and
    no zeros-row concat.  h/c are carried in f32 VMEM scratch across time chunks.
    """
    T, B, G = gates.shape
    H = G // 4
    Tt = T + 1
    bb = _batch_block(B)
    tc = min(chunk, T)
    n_c = pl.cdiv(T, tc)
    masked = (T % tc) != 0

    def kernel(h0_ref, c0_ref, g_ref, w_ref, hid_ref, h_scr, c_scr):
        ci = pl.program_id(1)

        @pl.when(ci == 0)
        def _():
            h_scr[...] = h0_ref[...]
            c_scr[...] = c0_ref[...]
            hid_ref[0] = jnp.zeros((bb, H), hid_ref.dtype)   # t = 0 row of the outputs

        whh_v = w_ref[...]
        h = h_scr[...]
        c = c_scr[...]
        for t in range(tc):                      # capped unroll (chunk <= 8)
            h_new, c_new = _lstm_step(g_ref[t], h, c, whh_v, H)
            if masked:
                pred = (ci * tc + t) < T
                h = jnp.where(pred, h_new, h)
                c = jnp.where(pred, c_new, c)

                @pl.when(pred)
                def _store(h_new=h_new, t=t):
                    hid_ref[1 + ci * tc + t] = h_new.astype(hid_ref.dtype)
            else:
                h, c = h_new, c_new
                hid_ref[1 + ci * tc + t] = h_new.astype(hid_ref.dtype)
        h_scr[...] = h
        c_scr[...] = c

    return pl.pallas_call(
        kernel,
        out_shape=jax.ShapeDtypeStruct((Tt, B, H), jnp.bfloat16),
        grid_spec=pltpu.PrefetchScalarGridSpec(
            num_scalar_prefetch=0,
            grid=(B // bb, n_c),
            in_specs=[
                pl.BlockSpec((bb, H), lambda bi, ci: (bi, 0)),
                pl.BlockSpec((bb, H), lambda bi, ci: (bi, 0)),
                pl.BlockSpec((tc, bb, G), lambda bi, ci: (ci, bi, 0)),
                pl.BlockSpec((H, G), lambda bi, ci: (0, 0)),
            ],
            # hid has a +1 time offset vs the gates, so keep it resident across chunks.
            out_specs=pl.BlockSpec((Tt, bb, H), lambda bi, ci: (0, bi, 0)),
            scratch_shapes=[pltpu.VMEM((bb, H), jnp.float32),
                            pltpu.VMEM((bb, H), jnp.float32)],
        ),
        compiler_params=pltpu.CompilerParams(
            dimension_semantics=("parallel", "arbitrary")),
    )(h0, c0, gates, whh)


# ------------------------------ forward pass -------------------------------- #

def seq2seq_forward(src, trg, params):
    """src: [Ts, B] int32, trg: [Tt, B] int32 -> outputs [Tt, B, V] f32 (row 0 = zeros)."""
    Ts, B = src.shape
    Tt = trg.shape[0]
    Td = Tt - 1
    H = params["enc_whh"].shape[0]
    V = params["dec_wfc"].shape[1]

    # Embedding gathers stay in XLA at toy vocab/E (tables are bf16).
    # TODO(synk): for non-toy vocab/E, gather in-kernel via scalar-prefetched token ids
    # (PrefetchScalarGridSpec + pl.Element row index_map) to avoid the [T,B,E] HBM round trip.
    src_emb = jnp.take(params["enc_emb"], src, axis=0)           # [Ts, B, E] bf16
    # Teacher forcing ratio fixed at 1.0 -> decoder input at step t is trg[t-1].
    # TODO(synk): stochastic teacher forcing (random.random()) / argmax feedback is
    # nondeterministic control flow; fixed at ratio=1.0 here.
    dec_emb = jnp.take(params["dec_emb"], trg[:-1], axis=0)      # [Td, B, E] bf16
    E = src_emb.shape[-1]

    # Hoisted, MXU-efficient input projections (x @ W_ih + b) for all timesteps at once.
    enc_gates = matmul_bias(src_emb.reshape(Ts * B, E),
                            params["enc_wih"], params["enc_b"]).reshape(Ts, B, 4 * H)
    dec_gates = matmul_bias(dec_emb.reshape(Td * B, E),
                            params["dec_wih"], params["dec_b"]).reshape(Td, B, 4 * H)

    # Serial recurrences: only h @ W_hh remains inside the time loops.
    h, c = lstm_encoder(enc_gates, params["enc_whh"])
    hid = lstm_decoder(dec_gates, params["dec_whh"], h, c)       # [Tt, B, H] bf16

    # Output projection writes the final logits buffer directly; rows of t=0 are zeroed
    # in-kernel (no zeros-row concat copying the whole logits tensor through HBM again).
    # TODO(synk): int8 (v5e/v6e) or fp8 (v7x) storage of dec_wfc would halve the
    # weight-read bound HBM traffic of this projection.
    logits = matmul_bias(hid.reshape(Tt * B, H),
                         params["dec_wfc"], params["dec_bfc"],
                         zero_rows=B, out_dtype=jnp.float32)     # [Tt*B, V]
    return logits.reshape(Tt, B, V)


# --------------------------------- setup ------------------------------------ #

def init_params(key, src_vocab, trg_vocab, emb_dim, hid_dim):
    ks = jax.random.split(key, 10)
    s = 0.1
    f32, bf16 = jnp.float32, jnp.bfloat16
    return {
        # Embedding tables + matmul weights in bf16 (f32 accumulation at every dot);
        # biases stay f32.  PyTorch's b_ih + b_hh are a single summed [1, 4H] bias here.
        "enc_emb": (s * jax.random.normal(ks[0], (src_vocab, emb_dim), f32)).astype(bf16),
        "enc_wih": (s * jax.random.normal(ks[1], (emb_dim, 4 * hid_dim), f32)).astype(bf16),
        "enc_whh": (s * jax.random.normal(ks[2], (hid_dim, 4 * hid_dim), f32)).astype(bf16),
        "enc_b": s * jax.random.normal(ks[3], (1, 4 * hid_dim), f32),
        "dec_emb": (s * jax.random.normal(ks[4], (trg_vocab, emb_dim), f32)).astype(bf16),
        "dec_wih": (s * jax.random.normal(ks[5], (emb_dim, 4 * hid_dim), f32)).astype(bf16),
        "dec_whh": (s * jax.random.normal(ks[6], (hid_dim, 4 * hid_dim), f32)).astype(bf16),
        "dec_b": s * jax.random.normal(ks[7], (1, 4 * hid_dim), f32),
        "dec_wfc": (s * jax.random.normal(ks[8], (hid_dim, trg_vocab), f32)).astype(bf16),
        "dec_bfc": s * jax.random.normal(ks[9], (1, trg_vocab), f32),
    }


if __name__ == "__main__":
    SRC_VOCAB, TRG_VOCAB = 16, 16
    EMB, HID = 32, 32
    SRC_LEN, TRG_LEN, BATCH = 8, 8, 8   # B=8 fills the f32 sublane dimension

    key = jax.random.PRNGKey(0)
    k_param, k_src, k_trg = jax.random.split(key, 3)

    params = init_params(k_param, SRC_VOCAB, TRG_VOCAB, EMB, HID)
    src = jax.random.randint(k_src, (SRC_LEN, BATCH), 0, SRC_VOCAB, jnp.int32)
    trg = jax.random.randint(k_trg, (TRG_LEN, BATCH), 0, TRG_VOCAB, jnp.int32)

    outputs = jax.jit(seq2seq_forward)(src, trg, params)
    outputs = jax.block_until_ready(outputs)

    assert outputs.shape == (TRG_LEN, BATCH, TRG_VOCAB)
    assert bool(jnp.all(outputs[0] == 0.0))
    assert bool(jnp.all(jnp.isfinite(outputs)))
    print("KERNEL_OK")
</pallas_src>

<mosaic_0001>
module attributes {stable_mosaic.version = 11 : i64} {
  func.func @kernel(%arg0: i32, %arg1: i32, %arg2: memref<64x32xbf16, #tpu.memory_space<vmem>>, %arg3: memref<32x128xbf16, #tpu.memory_space<vmem>>, %arg4: memref<1x128xf32, #tpu.memory_space<vmem>>, %arg5: memref<64x128xf32, #tpu.memory_space<vmem>>) attributes {dimension_semantics = [#tpu.dimension_semantics<parallel>, #tpu.dimension_semantics<arbitrary>], iteration_bounds = array<i64: 1, 1>, scalar_prefetch = 0 : i64, scratch_operands = 0 : i64, tpu.core_type = #tpu.core_type<tc>, window_params = [{transform_indices = @transform_0, window_bounds = array<i64: 64, 32>}, {transform_indices = @transform_1, window_bounds = array<i64: 32, 128>}, {transform_indices = @transform_2, window_bounds = array<i64: 1, 128>}, {transform_indices = @transform_3, window_bounds = array<i64: 64, 128>}]} {
    %c0 = arith.constant 0 : index
    %c0_0 = arith.constant 0 : index
    %0 = vector.load %arg2[%c0, %c0_0] : memref<64x32xbf16, #tpu.memory_space<vmem>>, vector<64x32xbf16>
    %c0_1 = arith.constant 0 : index
    %c0_2 = arith.constant 0 : index
    %1 = vector.load %arg3[%c0_1, %c0_2] : memref<32x128xbf16, #tpu.memory_space<vmem>>, vector<32x128xbf16>
    %cst = arith.constant dense<0.000000e+00> : vector<64x128xf32>
    %2 = tpu.matmul %0, %1, %cst {dimension_numbers = #tpu.dot_dimension_numbers<[1], [0], [0], [1], [0, 0, 1, 1], [], []>} : vector<64x32xbf16>, vector<32x128xbf16>, vector<64x128xf32> -> vector<64x128xf32>
    %c0_3 = arith.constant 0 : index
    %c0_4 = arith.constant 0 : index
    %3 = vector.load %arg4[%c0_3, %c0_4] : memref<1x128xf32, #tpu.memory_space<vmem>>, vector<1x128xf32>
    %4 = vector.broadcast %3 : vector<1x128xf32> to vector<64x128xf32>
    %5 = arith.addf %2, %4 : vector<64x128xf32>
    %c0_5 = arith.constant 0 : index
    %c0_6 = arith.constant 0 : index
    %6 = vector.load %arg5[%c0_5, %c0_6] : memref<64x128xf32, #tpu.memory_space<vmem>>, vector<64x128xf32>
    tpu.vector_store %arg5[%c0_5, %c0_6], %5 {strides = array<i32>} : memref<64x128xf32, #tpu.memory_space<vmem>>, vector<64x128xf32>,
    return
  }
  func.func @transform_0(%arg0: i32, %arg1: i32) -> (i32, i32) {
    %c0_i32 = arith.constant 0 : i32
    %c0_i32_0 = arith.constant 0 : i32
    return %arg1, %c0_i32 : i32, i32
  }
  func.func @transform_1(%arg0: i32, %arg1: i32) -> (i32, i32) {
    %c0_i32 = arith.constant 0 : i32
    %c0_i32_0 = arith.constant 0 : i32
    return %c0_i32, %arg0 : i32, i32
  }
  func.func @transform_2(%arg0: i32, %arg1: i32) -> (i32, i32) {
    %c0_i32 = arith.constant 0 : i32
    %c0_i32_0 = arith.constant 0 : i32
    return %c0_i32, %arg0 : i32, i32
  }
  func.func @transform_3(%arg0: i32, %arg1: i32) -> (i32, i32) {
    %c0_i32 = arith.constant 0 : i32
    return %arg1, %arg0 : i32, i32
  }
}

module attributes {stable_mosaic.version = 11 : i64} {
  func.func @kernel(%arg0: i32, %arg1: i32, %arg2: memref<8x8x128xf32, #tpu.memory_space<vmem>>, %arg3: memref<32x128xbf16, #tpu.memory_space<vmem>>, %arg4: memref<8x32xf32, #tpu.memory_space<vmem>>, %arg5: memref<8x32xf32, #tpu.memory_space<vmem>>) attributes {dimension_semantics = [#tpu.dimension_semantics<parallel>, #tpu.dimension_semantics<arbitrary>], iteration_bounds = array<i64: 1, 1>, scalar_prefetch = 0 : i64, scratch_operands = 0 : i64, tpu.core_type = #tpu.core_type<tc>, window_params = [{transform_indices = @transform_0, window_bounds = array<i64: 8, 8, 128>}, {pipeline_mode = #tpu.pipeline_mode<synchronous>, transform_indices = @transform_1, window_bounds = array<i64: 32, 128>}, {transform_indices = @transform_2, window_bounds = array<i64: 8, 32>}, {transform_indices = @transform_3, window_bounds = array<i64: 8, 32>}]} {
    %c0_i32 = arith.constant 0 : i32
    %0 = arith.cmpi eq, %arg1, %c0_i32 : i32
    %1 = arith.extui %0 : i1 to i32
    %c0_i32_0 = arith.constant 0 : i32
    %2 = arith.cmpi ne, %1, %c0_i32_0 : i32
    scf.if %2 {
      %cst_58 = arith.constant 0.000000e+00 : f32
      %248 = vector.broadcast %cst_58 : f32 to vector<8x32xf32>
      %c0_59 = arith.constant 0 : index
      %c0_60 = arith.constant 0 : index
      %249 = vector.load %arg4[%c0_59, %c0_60] : memref<8x32xf32, #tpu.memory_space<vmem>>, vector<8x32xf32>
      tpu.vector_store %arg4[%c0_59, %c0_60], %248 {strides = array<i32>} : memref<8x32xf32, #tpu.memory_space<vmem>>, vector<8x32xf32>,
      %cst_61 = arith.constant 0.000000e+00 : f32
      %250 = vector.broadcast %cst_61 : f32 to vector<8x32xf32>
      %c0_62 = arith.constant 0 : index
      %c0_63 = arith.constant 0 : index
      %251 = vector.load %arg5[%c0_62, %c0_63] : memref<8x32xf32, #tpu.memory_space<vmem>>, vector<8x32xf32>
      tpu.vector_store %arg5[%c0_62, %c0_63], %250 {strides = array<i32>} : memref<8x32xf32, #tpu.memory_space<vmem>>, vector<8x32xf32>,
    } else {
    }
    %c0 = arith.constant 0 : index
    %c0_1 = arith.constant 0 : index
    %3 = vector.load %arg3[%c0, %c0_1] : memref<32x128xbf16, #tpu.memory_space<vmem>>, vector<32x128xbf16>
    %c0_2 = arith.constant 0 : index
    %c0_3 = arith.constant 0 : index
    %4 = vector.load %arg4[%c0_2, %c0_3] : memref<8x32xf32, #tpu.memory_space<vmem>>, vector<8x32xf32>
    %c0_4 = arith.constant 0 : index
    %c0_5 = arith.constant 0 : index
    %5 = vector.load %arg5[%c0_4, %c0_5] : memref<8x32xf32, #tpu.memory_space<vmem>>, vector<8x32xf32>
    %c0_6 = arith.constant 0 : index
    %c0_7 = arith.constant 0 : index
    %c0_8 = arith.constant 0 : index
    %6 = vector.load %arg2[%c0_6, %c0_7, %c0_8] : memref<8x8x128xf32, #tpu.memory_space<vmem>>, vector<1x8x128xf32>
    %7 = vector.shape_cast %6 : vector<1x8x128xf32> to vector<8x128xf32>
    %8 = arith.truncf %4 : vector<8x32xf32> to vector<8x32xbf16>
    %cst = arith.constant dense<0.000000e+00> : vector<8x128xf32>
    %9 = tpu.matmul %8, %3, %cst {dimension_numbers = #tpu.dot_dimension_numbers<[1], [0], [0], [1], [0, 0, 1, 1], [], []>} : vector<8x32xbf16>, vector<32x128xbf16>, vector<8x128xf32> -> vector<8x128xf32>
    %10 = arith.addf %7, %9 : vector<8x128xf32>
    %11 = vector.extract_strided_slice %10 {offsets = [0, 0], sizes = [8, 32], strides = [1, 1]} : vector<8x128xf32> to vector<8x32xf32>
    %12 = arith.negf %11 : vector<8x32xf32>
    %13 = math.exp %12 : vector<8x32xf32>
    %cst_9 = arith.constant 1.000000e+00 : f32
    %14 = vector.broadcast %cst_9 : f32 to vector<8x32xf32>
    %15 = arith.addf %14, %13 : vector<8x32xf32>
    %16 = arith.divf %14, %15 : vector<8x32xf32>
    %17 = vector.extract_strided_slice %10 {offsets = [0, 32], sizes = [8, 32], strides = [1, 1]} : vector<8x128xf32> to vector<8x32xf32>
    %18 = arith.negf %17 : vector<8x32xf32>
    %19 = math.exp %18 : vector<8x32xf32>
    %cst_10 = arith.constant 1.000000e+00 : f32
    %20 = vector.broadcast %cst_10 : f32 to vector<8x32xf32>
    %21 = arith.addf %20, %19 : vector<8x32xf32>
    %22 = arith.divf %20, %21 : vector<8x32xf32>
    %23 = vector.extract_strided_slice %10 {offsets = [0, 64], sizes = [8, 32], strides = [1, 1]} : vector<8x128xf32> to vector<8x32xf32>
    %24 = math.tanh %23 : vector<8x32xf32>
    %25 = vector.extract_strided_slice %10 {offsets = [0, 96], sizes = [8, 32], strides = [1, 1]} : vector<8x128xf32> to vector<8x32xf32>
    %26 = arith.negf %25 : vector<8x32xf32>
    %27 = math.exp %26 : vector<8x32xf32>
    %cst_11 = arith.constant 1.000000e+00 : f32
    %28 = vector.broadcast %cst_11 : f32 to vector<8x32xf32>
    %29 = arith.addf %28, %27 : vector<8x32xf32>
    %30 = arith.divf %28, %29 : vector<8x32xf32>
    %31 = arith.mulf %22, %5 : vector<8x32xf32>
    %32 = arith.mulf %16, %24 : vector<8x32xf32>
    %33 = arith.addf %31, %32 : vector<8x32xf32>
    %34 = math.tanh %33 : vector<8x32xf32>
    %35 = arith.mulf %30, %34 : vector<8x32xf32>
    %c1 = arith.constant 1 : index
    %c0_12 = arith.constant 0 : index
    %c0_13 = arith.constant 0 : index
    %36 = vector.load %arg2[%c1, %c0_12, %c0_13] : memref<8x8x128xf32, #tpu.memory_space<vmem>>, vector<1x8x128xf32>
    %37 = vector.shape_cast %36 : vector<1x8x128xf32> to vector<8x128xf32>
    %38 = arith.truncf %35 : vector<8x32xf32> to vector<8x32xbf16>
    %cst_14 = arith.constant dense<0.000000e+00> : vector<8x128xf32>
    %39 = tpu.matmul %38, %3, %cst_14 {dimension_numbers = #tpu.dot_dimension_numbers<[1], [0], [0], [1], [0, 0, 1, 1], [], []>} : vector<8x32xbf16>, vector<32x128xbf16>, vector<8x128xf32> -> vector<8x128xf32>
    %40 = arith.addf %37, %39 : vector<8x128xf32>
    %41 = vector.extract_strided_slice %40 {offsets = [0, 0], sizes = [8, 32], strides = [1, 1]} : vector<8x128xf32> to vector<8x32xf32>
    %42 = arith.negf %41 : vector<8x32xf32>
    %43 = math.exp %42 : vector<8x32xf32>
    %cst_15 = arith.constant 1.000000e+00 : f32
    %44 = vector.broadcast %cst_15 : f32 to vector<8x32xf32>
    %45 = arith.addf %44, %43 : vector<8x32xf32>
    %46 = arith.divf %44, %45 : vector<8x32xf32>
    %47 = vector.extract_strided_slice %40 {offsets = [0, 32], sizes = [8, 32], strides = [1, 1]} : vector<8x128xf32> to vector<8x32xf32>
    %48 = arith.negf %47 : vector<8x32xf32>
    %49 = math.exp %48 : vector<8x32xf32>
    %cst_16 = arith.constant 1.000000e+00 : f32
    %50 = vector.broadcast %cst_16 : f32 to vector<8x32xf32>
    %51 = arith.addf %50, %49 : vector<8x32xf32>
    %52 = arith.divf %50, %51 : vector<8x32xf32>
    %53 = vector.extract_strided_slice %40 {offsets = [0, 64], sizes = [8, 32], strides = [1, 1]} : vector<8x128xf32> to vector<8x32xf32>
    %54 = math.tanh %53 : vector<8x32xf32>
    %55 = vector.extract_strided_slice %40 {offsets = [0, 96], sizes = [8, 32], strides = [1, 1]} : vector<8x128xf32> to vector<8x32xf32>
    %56 = arith.negf %55 : vector<8x32xf32>
    %57 = math.exp %56 : vector<8x32xf32>
    %cst_17 = arith.constant 1.000000e+00 : f32
    %58 = vector.broadcast %cst_17 : f32 to vector<8x32xf32>
    %59 = arith.addf %58, %57 : vector<8x32xf32>
    %60 = arith.divf %58, %59 : vector<8x32xf32>
    %61 = arith.mulf %52, %33 : vector<8x32xf32>
    %62 = arith.mulf %46, %54 : vector<8x32xf32>
    %63 = arith.addf %61, %62 : vector<8x32xf32>
    %64 = math.tanh %63 : vector<8x32xf32>
    %65 = arith.mulf %60, %64 : vector<8x32xf32>
    %c2 = arith.constant 2 : index
    %c0_18 = arith.constant 0 : index
    %c0_19 = arith.constant 0 : index
    %66 = vector.load %arg2[%c2, %c0_18, %c0_19] : memref<8x8x128xf32, #tpu.memory_space<vmem>>, vector<1x8x128xf32>
    %67 = vector.shape_cast %66 : vector<1x8x128xf32> to vector<8x128xf32>
    %68 = arith.truncf %65 : vector<8x32xf32> to vector<8x32xbf16>
    %cst_20 = arith.constant dense<0.000000e+00> : vector<8x128xf32>
    %69 = tpu.matmul %68, %3, %cst_20 {dimension_numbers = #tpu.dot_dimension_numbers<[1], [0], [0], [1], [0, 0, 1, 1], [], []>} : vector<8x32xbf16>, vector<32x128xbf16>, vector<8x128xf32> -> vector<8x128xf32>
    %70 = arith.addf %67, %69 : vector<8x128xf32>
    %71 = vector.extract_strided_slice %70 {offsets = [0, 0], sizes = [8, 32], strides = [1, 1]} : vector<8x128xf32> to vector<8x32xf32>
    %72 = arith.negf %71 : vector<8x32xf32>
    %73 = math.exp %72 : vector<8x32xf32>
    %cst_21 = arith.constant 1.000000e+00 : f32
    %74 = vector.broadcast %cst_21 : f32 to vector<8x32xf32>
    %75 = arith.addf %74, %73 : vector<8x32xf32>
    %76 = arith.divf %74, %75 : vector<8x32xf32>
    %77 = vector.extract_strided_slice %70 {offsets = [0, 32], sizes = [8, 32], strides = [1, 1]} : vector<8x128xf32> to vector<8x32xf32>
    %78 = arith.negf %77 : vector<8x32xf32>
    %79 = math.exp %78 : vector<8x32xf32>
    %cst_22 = arith.constant 1.000000e+00 : f32
    %80 = vector.broadcast %cst_22 : f32 to vector<8x32xf32>
    %81 = arith.addf %80, %79 : vector<8x32xf32>
    %82 = arith.divf %80, %81 : vector<8x32xf32>
    %83 = vector.extract_strided_slice %70 {offsets = [0, 64], sizes = [8, 32], strides = [1, 1]} : vector<8x128xf32> to vector<8x32xf32>
    %84 = math.tanh %83 : vector<8x32xf32>
    %85 = vector.extract_strided_slice %70 {offsets = [0, 96], sizes = [8, 32], strides = [1, 1]} : vector<8x128xf32> to vector<8x32xf32>
    %86 = arith.negf %85 : vector<8x32xf32>
    %87 = math.exp %86 : vector<8x32xf32>
    %cst_23 = arith.constant 1.000000e+00 : f32
    %88 = vector.broadcast %cst_23 : f32 to vector<8x32xf32>
    %89 = arith.addf %88, %87 : vector<8x32xf32>
    %90 = arith.divf %88, %89 : vector<8x32xf32>
    %91 = arith.mulf %82, %63 : vector<8x32xf32>
    %92 = arith.mulf %76, %84 : vector<8x32xf32>
    %93 = arith.addf %91, %92 : vector<8x32xf32>
    %94 = math.tanh %93 : vector<8x32xf32>
    %95 = arith.mulf %90, %94 : vector<8x32xf32>
    %c3 = arith.constant 3 : index
    %c0_24 = arith.constant 0 : index
    %c0_25 = arith.constant 0 : index
    %96 = vector.load %arg2[%c3, %c0_24, %c0_25] : memref<8x8x128xf32, #tpu.memory_space<vmem>>, vector<1x8x128xf32>
    %97 = vector.shape_cast %96 : vector<1x8x128xf32> to vector<8x128xf32>
    %98 = arith.truncf %95 : vector<8x32xf32> to vector<8x32xbf16>
    %cst_26 = arith.constant dense<0.000000e+00> : vector<8x128xf32>
    %99 = tpu.matmul %98, %3, %cst_26 {dimension_numbers = #tpu.dot_dimension_numbers<[1], [0], [0], [1], [0, 0, 1, 1], [], []>} : vector<8x32xbf16>, vector<32x128xbf16>, vector<8x128xf32> -> vector<8x128xf32>
    %100 = arith.addf %97, %99 : vector<8x128xf32>
    %101 = vector.extract_strided_slice %100 {offsets = [0, 0], sizes = [8, 32], strides = [1, 1]} : vector<8x128xf32> to vector<8x32xf32>
    %102 = arith.negf %101 : vector<8x32xf32>
    %103 = math.exp %102 : vector<8x32xf32>
    %cst_27 = arith.constant 1.000000e+00 : f32
    %104 = vector.broadcast %cst_27 : f32 to vector<8x32xf32>
    %105 = arith.addf %104, %103 : vector<8x32xf32>
    %106 = arith.divf %104, %105 : vector<8x32xf32>
    %107 = vector.extract_strided_slice %100 {offsets = [0, 32], sizes = [8, 32], strides = [1, 1]} : vector<8x128xf32> to vector<8x32xf32>
    %108 = arith.negf %107 : vector<8x32xf32>
    %109 = math.exp %108 : vector<8x32xf32>
    %cst_28 = arith.constant 1.000000e+00 : f32
    %110 = vector.broadcast %cst_28 : f32 to vector<8x32xf32>
    %111 = arith.addf %110, %109 : vector<8x32xf32>
    %112 = arith.divf %110, %111 : vector<8x32xf32>
    %113 = vector.extract_strided_slice %100 {offsets = [0, 64], sizes = [8, 32], strides = [1, 1]} : vector<8x128xf32> to vector<8x32xf32>
    %114 = math.tanh %113 : vector<8x32xf32>
    %115 = vector.extract_strided_slice %100 {offsets = [0, 96], sizes = [8, 32], strides = [1, 1]} : vector<8x128xf32> to vector<8x32xf32>
    %116 = arith.negf %115 : vector<8x32xf32>
    %117 = math.exp %116 : vector<8x32xf32>
    %cst_29 = arith.constant 1.000000e+00 : f32
    %118 = vector.broadcast %cst_29 : f32 to vector<8x32xf32>
    %119 = arith.addf %118, %117 : vector<8x32xf32>
    %120 = arith.divf %118, %119 : vector<8x32xf32>
    %121 = arith.mulf %112, %93 : vector<8x32xf32>
    %122 = arith.mulf %106, %114 : vector<8x32xf32>
    %123 = arith.addf %121, %122 : vector<8x32xf32>
    %124 = math.tanh %123 : vector<8x32xf32>
    %125 = arith.mulf %120, %124 : vector<8x32xf32>
    %c4 = arith.constant 4 : index
    %c0_30 = arith.constant 0 : index
    %c0_31 = arith.constant 0 : index
    %126 = vector.load %arg2[%c4, %c0_30, %c0_31] : memref<8x8x128xf32, #tpu.memory_space<vmem>>, vector<1x8x128xf32>
    %127 = vector.shape_cast %126 : vector<1x8x128xf32> to vector<8x128xf32>
    %128 = arith.truncf %125 : vector<8x32xf32> to vector<8x32xbf16>
    %cst_32 = arith.constant dense<0.000000e+00> : vector<8x128xf32>
    %129 = tpu.matmul %128, %3, %cst_32 {dimension_numbers = #tpu.dot_dimension_numbers<[1], [0], [0], [1], [0, 0, 1, 1], [], []>} : vector<8x32xbf16>, vector<32x128xbf16>, vector<8x128xf32> -> vector<8x128xf32>
    %130 = arith.addf %127, %129 : vector<8x128xf32>
    %131 = vector.extract_strided_slice %130 {offsets = [0, 0], sizes = [8, 32], strides = [1, 1]} : vector<8x128xf32> to vector<8x32xf32>
    %132 = arith.negf %131 : vector<8x32xf32>
    %133 = math.exp %132 : vector<8x32xf32>
    %cst_33 = arith.constant 1.000000e+00 : f32
    %134 = vector.broadcast %cst_33 : f32 to vector<8x32xf32>
    %135 = arith.addf %134, %133 : vector<8x32xf32>
    %136 = arith.divf %134, %135 : vector<8x32xf32>
    %137 = vector.extract_strided_slice %130 {offsets = [0, 32], sizes = [8, 32], strides = [1, 1]} : vector<8x128xf32> to vector<8x32xf32>
    %138 = arith.negf %137 : vector<8x32xf32>
    %139 = math.exp %138 : vector<8x32xf32>
    %cst_34 = arith.constant 1.000000e+00 : f32
    %140 = vector.broadcast %cst_34 : f32 to vector<8x32xf32>
    %141 = arith.addf %140, %139 : vector<8x32xf32>
    %142 = arith.divf %140, %141 : vector<8x32xf32>
    %143 = vector.extract_strided_slice %130 {offsets = [0, 64], sizes = [8, 32], strides = [1, 1]} : vector<8x128xf32> to vector<8x32xf32>
    %144 = math.tanh %143 : vector<8x32xf32>
    %145 = vector.extract_strided_slice %130 {offsets = [0, 96], sizes = [8, 32], strides = [1, 1]} : vector<8x128xf32> to vector<8x32xf32>
    %146 = arith.negf %145 : vector<8x32xf32>
    %147 = math.exp %146 : vector<8x32xf32>
    %cst_35 = arith.constant 1.000000e+00 : f32
    %148 = vector.broadcast %cst_35 : f32 to vector<8x32xf32>
    %149 = arith.addf %148, %147 : vector<8x32xf32>
    %150 = arith.divf %148, %149 : vector<8x32xf32>
    %151 = arith.mulf %142, %123 : vector<8x32xf32>
    %152 = arith.mulf %136, %144 : vector<8x32xf32>
    %153 = arith.addf %151, %152 : vector<8x32xf32>
    %154 = math.tanh %153 : vector<8x32xf32>
    %155 = arith.mulf %150, %154 : vector<8x32xf32>
    %c5 = arith.constant 5 : index
    %c0_36 = arith.constant 0 : index
    %c0_37 = arith.constant 0 : index
    %156 = vector.load %arg2[%c5, %c0_36, %c0_37] : memref<8x8x128xf32, #tpu.memory_space<vmem>>, vector<1x8x128xf32>
    %157 = vector.shape_cast %156 : vector<1x8x128xf32> to vector<8x128xf32>
    %158 = arith.truncf %155 : vector<8x32xf32> to vector<8x32xbf16>
    %cst_38 = arith.constant dense<0.000000e+00> : vector<8x128xf32>
    %159 = tpu.matmul %158, %3, %cst_38 {dimension_numbers = #tpu.dot_dimension_numbers<[1], [0], [0], [1], [0, 0, 1, 1], [], []>} : vector<8x32xbf16>, vector<32x128xbf16>, vector<8x128xf32> -> vector<8x128xf32>
    %160 = arith.addf %157, %159 : vector<8x128xf32>
    %161 = vector.extract_strided_slice %160 {offsets = [0, 0], sizes = [8, 32], strides = [1, 1]} : vector<8x128xf32> to vector<8x32xf32>
    %162 = arith.negf %161 : vector<8x32xf32>
    %163 = math.exp %162 : vector<8x32xf32>
    %cst_39 = arith.constant 1.000000e+00 : f32
    %164 = vector.broadcast %cst_39 : f32 to vector<8x32xf32>
    %165 = arith.addf %164, %163 : vector<8x32xf32>
    %166 = arith.divf %164, %165 : vector<8x32xf32>
    %167 = vector.extract_strided_slice %160 {offsets = [0, 32], sizes = [8, 32], strides = [1, 1]} : vector<8x128xf32> to vector<8x32xf32>
    %168 = arith.negf %167 : vector<8x32xf32>
    %169 = math.exp %168 : vector<8x32xf32>
    %cst_40 = arith.constant 1.000000e+00 : f32
    %170 = vector.broadcast %cst_40 : f32 to vector<8x32xf32>
    %171 = arith.addf %170, %169 : vector<8x32xf32>
    %172 = arith.divf %170, %171 : vector<8x32xf32>
    %173 = vector.extract_strided_slice %160 {offsets = [0, 64], sizes = [8, 32], strides = [1, 1]} : vector<8x128xf32> to vector<8x32xf32>
    %174 = math.tanh %173 : vector<8x32xf32>
    %175 = vector.extract_strided_slice %160 {offsets = [0, 96], sizes = [8, 32], strides = [1, 1]} : vector<8x128xf32> to vector<8x32xf32>
    %176 = arith.negf %175 : vector<8x32xf32>
    %177 = math.exp %176 : vector<8x32xf32>
    %cst_41 = arith.constant 1.000000e+00 : f32
    %178 = vector.broadcast %cst_41 : f32 to vector<8x32xf32>
    %179 = arith.addf %178, %177 : vector<8x32xf32>
    %180 = arith.divf %178, %179 : vector<8x32xf32>
    %181 = arith.mulf %172, %153 : vector<8x32xf32>
    %182 = arith.mulf %166, %174 : vector<8x32xf32>
    %183 = arith.addf %181, %182 : vector<8x32xf32>
    %184 = math.tanh %183 : vector<8x32xf32>
    %185 = arith.mulf %180, %184 : vector<8x32xf32>
    %c6 = arith.constant 6 : index
    %c0_42 = arith.constant 0 : index
    %c0_43 = arith.constant 0 : index
    %186 = vector.load %arg2[%c6, %c0_42, %c0_43] : memref<8x8x128xf32, #tpu.memory_space<vmem>>, vector<1x8x128xf32>
    %187 = vector.shape_cast %186 : vector<1x8x128xf32> to vector<8x128xf32>
    %188 = arith.truncf %185 : vector<8x32xf32> to vector<8x32xbf16>
    %cst_44 = arith.constant dense<0.000000e+00> : vector<8x128xf32>
    %189 = tpu.matmul %188, %3, %cst_44 {dimension_numbers = #tpu.dot_dimension_numbers<[1], [0], [0], [1], [0, 0, 1, 1], [], []>} : vector<8x32xbf16>, vector<32x128xbf16>, vector<8x128xf32> -> vector<8x128xf32>
    %190 = arith.addf %187, %189 : vector<8x128xf32>
    %191 = vector.extract_strided_slice %190 {offsets = [0, 0], sizes = [8, 32], strides = [1, 1]} : vector<8x128xf32> to vector<8x32xf32>
    %192 = arith.negf %191 : vector<8x32xf32>
    %193 = math.exp %192 : vector<8x32xf32>
    %cst_45 = arith.constant 1.000000e+00 : f32
    %194 = vector.broadcast %cst_45 : f32 to vector<8x32xf32>
    %195 = arith.addf %194, %193 : vector<8x32xf32>
    %196 = arith.divf %194, %195 : vector<8x32xf32>
    %197 = vector.extract_strided_slice %190 {offsets = [0, 32], sizes = [8, 32], strides = [1, 1]} : vector<8x128xf32> to vector<8x32xf32>
    %198 = arith.negf %197 : vector<8x32xf32>
    %199 = math.exp %198 : vector<8x32xf32>
    %cst_46 = arith.constant 1.000000e+00 : f32
    %200 = vector.broadcast %cst_46 : f32 to vector<8x32xf32>
    %201 = arith.addf %200, %199 : vector<8x32xf32>
    %202 = arith.divf %200, %201 : vector<8x32xf32>
    %203 = vector.extract_strided_slice %190 {offsets = [0, 64], sizes = [8, 32], strides = [1, 1]} : vector<8x128xf32> to vector<8x32xf32>
    %204 = math.tanh %203 : vector<8x32xf32>
    %205 = vector.extract_strided_slice %190 {offsets = [0, 96], sizes = [8, 32], strides = [1, 1]} : vector<8x128xf32> to vector<8x32xf32>
    %206 = arith.negf %205 : vector<8x32xf32>
    %207 = math.exp %206 : vector<8x32xf32>
    %cst_47 = arith.constant 1.000000e+00 : f32
    %208 = vector.broadcast %cst_47 : f32 to vector<8x32xf32>
    %209 = arith.addf %208, %207 : vector<8x32xf32>
    %210 = arith.divf %208, %209 : vector<8x32xf32>
    %211 = arith.mulf %202, %183 : vector<8x32xf32>
    %212 = arith.mulf %196, %204 : vector<8x32xf32>
    %213 = arith.addf %211, %212 : vector<8x32xf32>
    %214 = math.tanh %213 : vector<8x32xf32>
    %215 = arith.mulf %210, %214 : vector<8x32xf32>
    %c7 = arith.constant 7 : index
    %c0_48 = arith.constant 0 : index
    %c0_49 = arith.constant 0 : index
    %216 = vector.load %arg2[%c7, %c0_48, %c0_49] : memref<8x8x128xf32, #tpu.memory_space<vmem>>, vector<1x8x128xf32>
    %217 = vector.shape_cast %216 : vector<1x8x128xf32> to vector<8x128xf32>
    %218 = arith.truncf %215 : vector<8x32xf32> to vector<8x32xbf16>
    %cst_50 = arith.constant dense<0.000000e+00> : vector<8x128xf32>
    %219 = tpu.matmul %218, %3, %cst_50 {dimension_numbers = #tpu.dot_dimension_numbers<[1], [0], [0], [1], [0, 0, 1, 1], [], []>} : vector<8x32xbf16>, vector<32x128xbf16>, vector<8x128xf32> -> vector<8x128xf32>
    %220 = arith.addf %217, %219 : vector<8x128xf32>
    %221 = vector.extract_strided_slice %220 {offsets = [0, 0], sizes = [8, 32], strides = [1, 1]} : vector<8x128xf32> to vector<8x32xf32>
    %222 = arith.negf %221 : vector<8x32xf32>
    %223 = math.exp %222 : vector<8x32xf32>
    %cst_51 = arith.constant 1.000000e+00 : f32
    %224 = vector.broadcast %cst_51 : f32 to vector<8x32xf32>
    %225 = arith.addf %224, %223 : vector<8x32xf32>
    %226 = arith.divf %224, %225 : vector<8x32xf32>
    %227 = vector.extract_strided_slice %220 {offsets = [0, 32], sizes = [8, 32], strides = [1, 1]} : vector<8x128xf32> to vector<8x32xf32>
    %228 = arith.negf %227 : vector<8x32xf32>
    %229 = math.exp %228 : vector<8x32xf32>
    %cst_52 = arith.constant 1.000000e+00 : f32
    %230 = vector.broadcast %cst_52 : f32 to vector<8x32xf32>
    %231 = arith.addf %230, %229 : vector<8x32xf32>
    %232 = arith.divf %230, %231 : vector<8x32xf32>
    %233 = vector.extract_strided_slice %220 {offsets = [0, 64], sizes = [8, 32], strides = [1, 1]} : vector<8x128xf32> to vector<8x32xf32>
    %234 = math.tanh %233 : vector<8x32xf32>
    %235 = vector.extract_strided_slice %220 {offsets = [0, 96], sizes = [8, 32], strides = [1, 1]} : vector<8x128xf32> to vector<8x32xf32>
    %236 = arith.negf %235 : vector<8x32xf32>
    %237 = math.exp %236 : vector<8x32xf32>
    %cst_53 = arith.constant 1.000000e+00 : f32
    %238 = vector.broadcast %cst_53 : f32 to vector<8x32xf32>
    %239 = arith.addf %238, %237 : vector<8x32xf32>
    %240 = arith.divf %238, %239 : vector<8x32xf32>
    %241 = arith.mulf %232, %213 : vector<8x32xf32>
    %242 = arith.mulf %226, %234 : vector<8x32xf32>
    %243 = arith.addf %241, %242 : vector<8x32xf32>
    %244 = math.tanh %243 : vector<8x32xf32>
    %245 = arith.mulf %240, %244 : vector<8x32xf32>
    %c0_54 = arith.constant 0 : index
    %c0_55 = arith.constant 0 : index
    %246 = vector.load %arg4[%c0_54, %c0_55] : memref<8x32xf32, #tpu.memory_space<vmem>>, vector<8x32xf32>
    tpu.vector_store %arg4[%c0_54, %c0_55], %245 {strides = array<i32>} : memref<8x32xf32, #tpu.memory_space<vmem>>, vector<8x32xf32>,
    %c0_56 = arith.constant 0 : index
    %c0_57 = arith.constant 0 : index
    %247 = vector.load %arg5[%c0_56, %c0_57] : memref<8x32xf32, #tpu.memory_space<vmem>>, vector<8x32xf32>
    tpu.vector_store %arg5[%c0_56, %c0_57], %243 {strides = array<i32>} : memref<8x32xf32, #tpu.memory_space<vmem>>, vector<8x32xf32>,
    return
  }
  func.func @transform_0(%arg0: i32, %arg1: i32) -> (i32, i32, i32) {
    %c0_i32 = arith.constant 0 : i32
    %c0_i32_0 = arith.constant 0 : i32
    return %arg1, %arg0, %c0_i32 : i32, i32, i32
  }
  func.func @transform_1(%arg0: i32, %arg1: i32) -> (i32, i32) {
    %c0_i32 = arith.constant 0 : i32
    %c0_i32_0 = arith.constant 0 : i32
    %c0_i32_1 = arith.constant 0 : i32
    return %c0_i32, %c0_i32_0 : i32, i32
  }
  func.func @transform_2(%arg0: i32, %arg1: i32) -> (i32, i32) {
    %c0_i32 = arith.constant 0 : i32
    %c0_i32_0 = arith.constant 0 : i32
    return %arg0, %c0_i32 : i32, i32
  }
  func.func @transform_3(%arg0: i32, %arg1: i32) -> (i32, i32) {
    %c0_i32 = arith.constant 0 : i32
    %c0_i32_0 = arith.constant 0 : i32
    return %arg0, %c0_i32 : i32, i32
  }
}

module attributes {stable_mosaic.version = 11 : i64} {
  func.func @kernel(%arg0: i32, %arg1: i32, %arg2: memref<56x32xbf16, #tpu.memory_space<vmem>>, %arg3: memref<32x128xbf16, #tpu.memory_space<vmem>>, %arg4: memref<1x128xf32, #tpu.memory_space<vmem>>, %arg5: memref<56x128xf32, #tpu.memory_space<vmem>>) attributes {dimension_semantics = [#tpu.dimension_semantics<parallel>, #tpu.dimension_semantics<arbitrary>], iteration_bounds = array<i64: 1, 1>, scalar_prefetch = 0 : i64, scratch_operands = 0 : i64, tpu.core_type = #tpu.core_type<tc>, window_params = [{transform_indices = @transform_0, window_bounds = array<i64: 56, 32>}, {transform_indices = @transform_1, window_bounds = array<i64: 32, 128>}, {transform_indices = @transform_2, window_bounds = array<i64: 1, 128>}, {transform_indices = @transform_3, window_bounds = array<i64: 56, 128>}]} {
    %c0 = arith.constant 0 : index
    %c0_0 = arith.constant 0 : index
    %0 = vector.load %arg2[%c0, %c0_0] : memref<56x32xbf16, #tpu.memory_space<vmem>>, vector<56x32xbf16>
    %c0_1 = arith.constant 0 : index
    %c0_2 = arith.constant 0 : index
    %1 = vector.load %arg3[%c0_1, %c0_2] : memref<32x128xbf16, #tpu.memory_space<vmem>>, vector<32x128xbf16>
    %cst = arith.constant dense<0.000000e+00> : vector<56x128xf32>
    %2 = tpu.matmul %0, %1, %cst {dimension_numbers = #tpu.dot_dimension_numbers<[1], [0], [0], [1], [0, 0, 1, 1], [], []>} : vector<56x32xbf16>, vector<32x128xbf16>, vector<56x128xf32> -> vector<56x128xf32>
    %c0_3 = arith.constant 0 : index
    %c0_4 = arith.constant 0 : index
    %3 = vector.load %arg4[%c0_3, %c0_4] : memref<1x128xf32, #tpu.memory_space<vmem>>, vector<1x128xf32>
    %4 = vector.broadcast %3 : vector<1x128xf32> to vector<56x128xf32>
    %5 = arith.addf %2, %4 : vector<56x128xf32>
    %c0_5 = arith.constant 0 : index
    %c0_6 = arith.constant 0 : index
    %6 = vector.load %arg5[%c0_5, %c0_6] : memref<56x128xf32, #tpu.memory_space<vmem>>, vector<56x128xf32>
    tpu.vector_store %arg5[%c0_5, %c0_6], %5 {strides = array<i32>} : memref<56x128xf32, #tpu.memory_space<vmem>>, vector<56x128xf32>,
    return
  }
  func.func @transform_0(%arg0: i32, %arg1: i32) -> (i32, i32) {
    %c0_i32 = arith.constant 0 : i32
    %c0_i32_0 = arith.constant 0 : i32
    return %arg1, %c0_i32 : i32, i32
  }
  func.func @transform_1(%arg0: i32, %arg1: i32) -> (i32, i32) {
    %c0_i32 = arith.constant 0 : i32
    %c0_i32_0 = arith.constant 0 : i32
    return %c0_i32, %arg0 : i32, i32
  }
  func.func @transform_2(%arg0: i32, %arg1: i32) -> (i32, i32) {
    %c0_i32 = arith.constant 0 : i32
    %c0_i32_0 = arith.constant 0 : i32
    return %c0_i32, %arg0 : i32, i32
  }
  func.func @transform_3(%arg0: i32, %arg1: i32) -> (i32, i32) {
    %c0_i32 = arith.constant 0 : i32
    return %arg1, %arg0 : i32, i32
  }
}

module attributes {stable_mosaic.version = 11 : i64} {
  func.func @kernel(%arg0: i32, %arg1: i32, %arg2: memref<8x32xf32, #tpu.memory_space<vmem>>, %arg3: memref<8x32xf32, #tpu.memory_space<vmem>>, %arg4: memref<7x8x128xf32, #tpu.memory_space<vmem>>, %arg5: memref<32x128xbf16, #tpu.memory_space<vmem>>, %arg6: memref<8x8x32xbf16, #tpu.memory_space<vmem>>, %arg7: memref<8x32xf32, #tpu.memory_space<vmem>>, %arg8: memref<8x32xf32, #tpu.memory_space<vmem>>) attributes {dimension_semantics = [#tpu.dimension_semantics<parallel>, #tpu.dimension_semantics<arbitrary>], iteration_bounds = array<i64: 1, 1>, scalar_prefetch = 0 : i64, scratch_operands = 2 : i64, tpu.core_type = #tpu.core_type<tc>, window_params = [{transform_indices = @transform_0, window_bounds = array<i64: 8, 32>}, {transform_indices = @transform_1, window_bounds = array<i64: 8, 32>}, {transform_indices = @transform_2, window_bounds = array<i64: 7, 8, 128>}, {pipeline_mode = #tpu.pipeline_mode<synchronous>, transform_indices = @transform_3, window_bounds = array<i64: 32, 128>}, {transform_indices = @transform_4, window_bounds = array<i64: 8, 8, 32>}]} {
    %c0_i32 = arith.constant 0 : i32
    %0 = arith.cmpi eq, %arg1, %c0_i32 : i32
    %1 = arith.extui %0 : i1 to i32
    %c0_i32_0 = arith.constant 0 : i32
    %2 = arith.cmpi ne, %1, %c0_i32_0 : i32
    scf.if %2 {
      %c0_80 = arith.constant 0 : index
      %c0_81 = arith.constant 0 : index
      %274 = vector.load %arg2[%c0_80, %c0_81] : memref<8x32xf32, #tpu.memory_space<vmem>>, vector<8x32xf32>
      %c0_82 = arith.constant 0 : index
      %c0_83 = arith.constant 0 : index
      %275 = vector.load %arg7[%c0_82, %c0_83] : memref<8x32xf32, #tpu.memory_space<vmem>>, vector<8x32xf32>
      tpu.vector_store %arg7[%c0_82, %c0_83], %274 {strides = array<i32>} : memref<8x32xf32, #tpu.memory_space<vmem>>, vector<8x32xf32>,
      %c0_84 = arith.constant 0 : index
      %c0_85 = arith.constant 0 : index
      %276 = vector.load %arg3[%c0_84, %c0_85] : memref<8x32xf32, #tpu.memory_space<vmem>>, vector<8x32xf32>
      %c0_86 = arith.constant 0 : index
      %c0_87 = arith.constant 0 : index
      %277 = vector.load %arg8[%c0_86, %c0_87] : memref<8x32xf32, #tpu.memory_space<vmem>>, vector<8x32xf32>
      tpu.vector_store %arg8[%c0_86, %c0_87], %276 {strides = array<i32>} : memref<8x32xf32, #tpu.memory_space<vmem>>, vector<8x32xf32>,
      %cst_88 = arith.constant 0.000000e+00 : bf16
      %278 = vector.broadcast %cst_88 : bf16 to vector<8x32xbf16>
      %c0_89 = arith.constant 0 : index
      %c0_90 = arith.constant 0 : index
      %c0_91 = arith.constant 0 : index
      %279 = vector.load %arg6[%c0_89, %c0_90, %c0_91] : memref<8x8x32xbf16, #tpu.memory_space<vmem>>, vector<1x8x32xbf16>
      %280 = vector.shape_cast %279 : vector<1x8x32xbf16> to vector<8x32xbf16>
      %281 = vector.shape_cast %278 : vector<8x32xbf16> to vector<1x8x32xbf16>
      tpu.vector_store %arg6[%c0_89, %c0_90, %c0_91], %281 {strides = array<i32>} : memref<8x8x32xbf16, #tpu.memory_space<vmem>>, vector<1x8x32xbf16>,
    } else {
    }
    %c0 = arith.constant 0 : index
    %c0_1 = arith.constant 0 : index
    %3 = vector.load %arg5[%c0, %c0_1] : memref<32x128xbf16, #tpu.memory_space<vmem>>, vector<32x128xbf16>
    %c0_2 = arith.constant 0 : index
    %c0_3 = arith.constant 0 : index
    %4 = vector.load %arg7[%c0_2, %c0_3] : memref<8x32xf32, #tpu.memory_space<vmem>>, vector<8x32xf32>
    %c0_4 = arith.constant 0 : index
    %c0_5 = arith.constant 0 : index
    %5 = vector.load %arg8[%c0_4, %c0_5] : memref<8x32xf32, #tpu.memory_space<vmem>>, vector<8x32xf32>
    %c0_6 = arith.constant 0 : index
    %c0_7 = arith.constant 0 : index
    %c0_8 = arith.constant 0 : index
    %6 = vector.load %arg4[%c0_6, %c0_7, %c0_8] : memref<7x8x128xf32, #tpu.memory_space<vmem>>, vector<1x8x128xf32>
    %7 = vector.shape_cast %6 : vector<1x8x128xf32> to vector<8x128xf32>
    %8 = arith.truncf %4 : vector<8x32xf32> to vector<8x32xbf16>
    %cst = arith.constant dense<0.000000e+00> : vector<8x128xf32>
    %9 = tpu.matmul %8, %3, %cst {dimension_numbers = #tpu.dot_dimension_numbers<[1], [0], [0], [1], [0, 0, 1, 1], [], []>} : vector<8x32xbf16>, vector<32x128xbf16>, vector<8x128xf32> -> vector<8x128xf32>
    %10 = arith.addf %7, %9 : vector<8x128xf32>
    %11 = vector.extract_strided_slice %10 {offsets = [0, 0], sizes = [8, 32], strides = [1, 1]} : vector<8x128xf32> to vector<8x32xf32>
    %12 = arith.negf %11 : vector<8x32xf32>
    %13 = math.exp %12 : vector<8x32xf32>
    %cst_9 = arith.constant 1.000000e+00 : f32
    %14 = vector.broadcast %cst_9 : f32 to vector<8x32xf32>
    %15 = arith.addf %14, %13 : vector<8x32xf32>
    %16 = arith.divf %14, %15 : vector<8x32xf32>
    %17 = vector.extract_strided_slice %10 {offsets = [0, 32], sizes = [8, 32], strides = [1, 1]} : vector<8x128xf32> to vector<8x32xf32>
    %18 = arith.negf %17 : vector<8x32xf32>
    %19 = math.exp %18 : vector<8x32xf32>
    %cst_10 = arith.constant 1.000000e+00 : f32
    %20 = vector.broadcast %cst_10 : f32 to vector<8x32xf32>
    %21 = arith.addf %20, %19 : vector<8x32xf32>
    %22 = arith.divf %20, %21 : vector<8x32xf32>
    %23 = vector.extract_strided_slice %10 {offsets = [0, 64], sizes = [8, 32], strides = [1, 1]} : vector<8x128xf32> to vector<8x32xf32>
    %24 = math.tanh %23 : vector<8x32xf32>
    %25 = vector.extract_strided_slice %10 {offsets = [0, 96], sizes = [8, 32], strides = [1, 1]} : vector<8x128xf32> to vector<8x32xf32>
    %26 = arith.negf %25 : vector<8x32xf32>
    %27 = math.exp %26 : vector<8x32xf32>
    %cst_11 = arith.constant 1.000000e+00 : f32
    %28 = vector.broadcast %cst_11 : f32 to vector<8x32xf32>
    %29 = arith.addf %28, %27 : vector<8x32xf32>
    %30 = arith.divf %28, %29 : vector<8x32xf32>
    %31 = arith.mulf %22, %5 : vector<8x32xf32>
    %32 = arith.mulf %16, %24 : vector<8x32xf32>
    %33 = arith.addf %31, %32 : vector<8x32xf32>
    %34 = math.tanh %33 : vector<8x32xf32>
    %35 = arith.mulf %30, %34 : vector<8x32xf32>
    %36 = arith.truncf %35 : vector<8x32xf32> to vector<8x32xbf16>
    %c7_i32 = arith.constant 7 : i32
    %37 = arith.muli %arg1, %c7_i32 : i32
    %c1_i32 = arith.constant 1 : i32
    %38 = arith.addi %c1_i32, %37 : i32
    %c0_i32_12 = arith.constant 0 : i32
    %39 = arith.addi %38, %c0_i32_12 : i32
    %40 = arith.index_cast %39 : i32 to index
    %c0_13 = arith.constant 0 : index
    %c0_14 = arith.constant 0 : index
    %41 = vector.load %arg6[%40, %c0_13, %c0_14] : memref<8x8x32xbf16, #tpu.memory_space<vmem>>, vector<1x8x32xbf16>
    %42 = vector.shape_cast %41 : vector<1x8x32xbf16> to vector<8x32xbf16>
    %43 = vector.shape_cast %36 : vector<8x32xbf16> to vector<1x8x32xbf16>
    tpu.vector_store %arg6[%40, %c0_13, %c0_14], %43 {strides = array<i32>} : memref<8x8x32xbf16, #tpu.memory_space<vmem>>, vector<1x8x32xbf16>,
    %c1 = arith.constant 1 : index
    %c0_15 = arith.constant 0 : index
    %c0_16 = arith.constant 0 : index
    %44 = vector.load %arg4[%c1, %c0_15, %c0_16] : memref<7x8x128xf32, #tpu.memory_space<vmem>>, vector<1x8x128xf32>
    %45 = vector.shape_cast %44 : vector<1x8x128xf32> to vector<8x128xf32>
    %46 = arith.truncf %35 : vector<8x32xf32> to vector<8x32xbf16>
    %cst_17 = arith.constant dense<0.000000e+00> : vector<8x128xf32>
    %47 = tpu.matmul %46, %3, %cst_17 {dimension_numbers = #tpu.dot_dimension_numbers<[1], [0], [0], [1], [0, 0, 1, 1], [], []>} : vector<8x32xbf16>, vector<32x128xbf16>, vector<8x128xf32> -> vector<8x128xf32>
    %48 = arith.addf %45, %47 : vector<8x128xf32>
    %49 = vector.extract_strided_slice %48 {offsets = [0, 0], sizes = [8, 32], strides = [1, 1]} : vector<8x128xf32> to vector<8x32xf32>
    %50 = arith.negf %49 : vector<8x32xf32>
    %51 = math.exp %50 : vector<8x32xf32>
    %cst_18 = arith.constant 1.000000e+00 : f32
    %52 = vector.broadcast %cst_18 : f32 to vector<8x32xf32>
    %53 = arith.addf %52, %51 : vector<8x32xf32>
    %54 = arith.divf %52, %53 : vector<8x32xf32>
    %55 = vector.extract_strided_slice %48 {offsets = [0, 32], sizes = [8, 32], strides = [1, 1]} : vector<8x128xf32> to vector<8x32xf32>
    %56 = arith.negf %55 : vector<8x32xf32>
    %57 = math.exp %56 : vector<8x32xf32>
    %cst_19 = arith.constant 1.000000e+00 : f32
    %58 = vector.broadcast %cst_19 : f32 to vector<8x32xf32>
    %59 = arith.addf %58, %57 : vector<8x32xf32>
    %60 = arith.divf %58, %59 : vector<8x32xf32>
    %61 = vector.extract_strided_slice %48 {offsets = [0, 64], sizes = [8, 32], strides = [1, 1]} : vector<8x128xf32> to vector<8x32xf32>
    %62 = math.tanh %61 : vector<8x32xf32>
    %63 = vector.extract_strided_slice %48 {offsets = [0, 96], sizes = [8, 32], strides = [1, 1]} : vector<8x128xf32> to vector<8x32xf32>
    %64 = arith.negf %63 : vector<8x32xf32>
    %65 = math.exp %64 : vector<8x32xf32>
    %cst_20 = arith.constant 1.000000e+00 : f32
    %66 = vector.broadcast %cst_20 : f32 to vector<8x32xf32>
    %67 = arith.addf %66, %65 : vector<8x32xf32>
    %68 = arith.divf %66, %67 : vector<8x32xf32>
    %69 = arith.mulf %60, %33 : vector<8x32xf32>
    %70 = arith.mulf %54, %62 : vector<8x32xf32>
    %71 = arith.addf %69, %70 : vector<8x32xf32>
    %72 = math.tanh %71 : vector<8x32xf32>
    %73 = arith.mulf %68, %72 : vector<8x32xf32>
    %74 = arith.truncf %73 : vector<8x32xf32> to vector<8x32xbf16>
    %c7_i32_21 = arith.constant 7 : i32
    %75 = arith.muli %arg1, %c7_i32_21 : i32
    %c1_i32_22 = arith.constant 1 : i32
    %76 = arith.addi %c1_i32_22, %75 : i32
    %c1_i32_23 = arith.constant 1 : i32
    %77 = arith.addi %76, %c1_i32_23 : i32
    %78 = arith.index_cast %77 : i32 to index
    %c0_24 = arith.constant 0 : index
    %c0_25 = arith.constant 0 : index
    %79 = vector.load %arg6[%78, %c0_24, %c0_25] : memref<8x8x32xbf16, #tpu.memory_space<vmem>>, vector<1x8x32xbf16>
    %80 = vector.shape_cast %79 : vector<1x8x32xbf16> to vector<8x32xbf16>
    %81 = vector.shape_cast %74 : vector<8x32xbf16> to vector<1x8x32xbf16>
    tpu.vector_store %arg6[%78, %c0_24, %c0_25], %81 {strides = array<i32>} : memref<8x8x32xbf16, #tpu.memory_space<vmem>>, vector<1x8x32xbf16>,
    %c2 = arith.constant 2 : index
    %c0_26 = arith.constant 0 : index
    %c0_27 = arith.constant 0 : index
    %82 = vector.load %arg4[%c2, %c0_26, %c0_27] : memref<7x8x128xf32, #tpu.memory_space<vmem>>, vector<1x8x128xf32>
    %83 = vector.shape_cast %82 : vector<1x8x128xf32> to vector<8x128xf32>
    %84 = arith.truncf %73 : vector<8x32xf32> to vector<8x32xbf16>
    %cst_28 = arith.constant dense<0.000000e+00> : vector<8x128xf32>
    %85 = tpu.matmul %84, %3, %cst_28 {dimension_numbers = #tpu.dot_dimension_numbers<[1], [0], [0], [1], [0, 0, 1, 1], [], []>} : vector<8x32xbf16>, vector<32x128xbf16>, vector<8x128xf32> -> vector<8x128xf32>
    %86 = arith.addf %83, %85 : vector<8x128xf32>
    %87 = vector.extract_strided_slice %86 {offsets = [0, 0], sizes = [8, 32], strides = [1, 1]} : vector<8x128xf32> to vector<8x32xf32>
    %88 = arith.negf %87 : vector<8x32xf32>
    %89 = math.exp %88 : vector<8x32xf32>
    %cst_29 = arith.constant 1.000000e+00 : f32
    %90 = vector.broadcast %cst_29 : f32 to vector<8x32xf32>
    %91 = arith.addf %90, %89 : vector<8x32xf32>
    %92 = arith.divf %90, %91 : vector<8x32xf32>
    %93 = vector.extract_strided_slice %86 {offsets = [0, 32], sizes = [8, 32], strides = [1, 1]} : vector<8x128xf32> to vector<8x32xf32>
    %94 = arith.negf %93 : vector<8x32xf32>
    %95 = math.exp %94 : vector<8x32xf32>
    %cst_30 = arith.constant 1.000000e+00 : f32
    %96 = vector.broadcast %cst_30 : f32 to vector<8x32xf32>
    %97 = arith.addf %96, %95 : vector<8x32xf32>
    %98 = arith.divf %96, %97 : vector<8x32xf32>
    %99 = vector.extract_strided_slice %86 {offsets = [0, 64], sizes = [8, 32], strides = [1, 1]} : vector<8x128xf32> to vector<8x32xf32>
    %100 = math.tanh %99 : vector<8x32xf32>
    %101 = vector.extract_strided_slice %86 {offsets = [0, 96], sizes = [8, 32], strides = [1, 1]} : vector<8x128xf32> to vector<8x32xf32>
    %102 = arith.negf %101 : vector<8x32xf32>
    %103 = math.exp %102 : vector<8x32xf32>
    %cst_31 = arith.constant 1.000000e+00 : f32
    %104 = vector.broadcast %cst_31 : f32 to vector<8x32xf32>
    %105 = arith.addf %104, %103 : vector<8x32xf32>
    %106 = arith.divf %104, %105 : vector<8x32xf32>
    %107 = arith.mulf %98, %71 : vector<8x32xf32>
    %108 = arith.mulf %92, %100 : vector<8x32xf32>
    %109 = arith.addf %107, %108 : vector<8x32xf32>
    %110 = math.tanh %109 : vector<8x32xf32>
    %111 = arith.mulf %106, %110 : vector<8x32xf32>
    %112 = arith.truncf %111 : vector<8x32xf32> to vector<8x32xbf16>
    %c7_i32_32 = arith.constant 7 : i32
    %113 = arith.muli %arg1, %c7_i32_32 : i32
    %c1_i32_33 = arith.constant 1 : i32
    %114 = arith.addi %c1_i32_33, %113 : i32
    %c2_i32 = arith.constant 2 : i32
    %115 = arith.addi %114, %c2_i32 : i32
    %116 = arith.index_cast %115 : i32 to index
    %c0_34 = arith.constant 0 : index
    %c0_35 = arith.constant 0 : index
    %117 = vector.load %arg6[%116, %c0_34, %c0_35] : memref<8x8x32xbf16, #tpu.memory_space<vmem>>, vector<1x8x32xbf16>
    %118 = vector.shape_cast %117 : vector<1x8x32xbf16> to vector<8x32xbf16>
    %119 = vector.shape_cast %112 : vector<8x32xbf16> to vector<1x8x32xbf16>
    tpu.vector_store %arg6[%116, %c0_34, %c0_35], %119 {strides = array<i32>} : memref<8x8x32xbf16, #tpu.memory_space<vmem>>, vector<1x8x32xbf16>,
    %c3 = arith.constant 3 : index
    %c0_36 = arith.constant 0 : index
    %c0_37 = arith.constant 0 : index
    %120 = vector.load %arg4[%c3, %c0_36, %c0_37] : memref<7x8x128xf32, #tpu.memory_space<vmem>>, vector<1x8x128xf32>
    %121 = vector.shape_cast %120 : vector<1x8x128xf32> to vector<8x128xf32>
    %122 = arith.truncf %111 : vector<8x32xf32> to vector<8x32xbf16>
    %cst_38 = arith.constant dense<0.000000e+00> : vector<8x128xf32>
    %123 = tpu.matmul %122, %3, %cst_38 {dimension_numbers = #tpu.dot_dimension_numbers<[1], [0], [0], [1], [0, 0, 1, 1], [], []>} : vector<8x32xbf16>, vector<32x128xbf16>, vector<8x128xf32> -> vector<8x128xf32>
    %124 = arith.addf %121, %123 : vector<8x128xf32>
    %125 = vector.extract_strided_slice %124 {offsets = [0, 0], sizes = [8, 32], strides = [1, 1]} : vector<8x128xf32> to vector<8x32xf32>
    %126 = arith.negf %125 : vector<8x32xf32>
    %127 = math.exp %126 : vector<8x32xf32>
    %cst_39 = arith.constant 1.000000e+00 : f32
    %128 = vector.broadcast %cst_39 : f32 to vector<8x32xf32>
    %129 = arith.addf %128, %127 : vector<8x32xf32>
    %130 = arith.divf %128, %129 : vector<8x32xf32>
    %131 = vector.extract_strided_slice %124 {offsets = [0, 32], sizes = [8, 32], strides = [1, 1]} : vector<8x128xf32> to vector<8x32xf32>
    %132 = arith.negf %131 : vector<8x32xf32>
    %133 = math.exp %132 : vector<8x32xf32>
    %cst_40 = arith.constant 1.000000e+00 : f32
    %134 = vector.broadcast %cst_40 : f32 to vector<8x32xf32>
    %135 = arith.addf %134, %133 : vector<8x32xf32>
    %136 = arith.divf %134, %135 : vector<8x32xf32>
    %137 = vector.extract_strided_slice %124 {offsets = [0, 64], sizes = [8, 32], strides = [1, 1]} : vector<8x128xf32> to vector<8x32xf32>
    %138 = math.tanh %137 : vector<8x32xf32>
    %139 = vector.extract_strided_slice %124 {offsets = [0, 96], sizes = [8, 32], strides = [1, 1]} : vector<8x128xf32> to vector<8x32xf32>
    %140 = arith.negf %139 : vector<8x32xf32>
    %141 = math.exp %140 : vector<8x32xf32>
    %cst_41 = arith.constant 1.000000e+00 : f32
    %142 = vector.broadcast %cst_41 : f32 to vector<8x32xf32>
    %143 = arith.addf %142, %141 : vector<8x32xf32>
    %144 = arith.divf %142, %143 : vector<8x32xf32>
    %145 = arith.mulf %136, %109 : vector<8x32xf32>
    %146 = arith.mulf %130, %138 : vector<8x32xf32>
    %147 = arith.addf %145, %146 : vector<8x32xf32>
    %148 = math.tanh %147 : vector<8x32xf32>
    %149 = arith.mulf %144, %148 : vector<8x32xf32>
    %150 = arith.truncf %149 : vector<8x32xf32> to vector<8x32xbf16>
    %c7_i32_42 = arith.constant 7 : i32
    %151 = arith.muli %arg1, %c7_i32_42 : i32
    %c1_i32_43 = arith.constant 1 : i32
    %152 = arith.addi %c1_i32_43, %151 : i32
    %c3_i32 = arith.constant 3 : i32
    %153 = arith.addi %152, %c3_i32 : i32
    %154 = arith.index_cast %153 : i32 to index
    %c0_44 = arith.constant 0 : index
    %c0_45 = arith.constant 0 : index
    %155 = vector.load %arg6[%154, %c0_44, %c0_45] : memref<8x8x32xbf16, #tpu.memory_space<vmem>>, vector<1x8x32xbf16>
    %156 = vector.shape_cast %155 : vector<1x8x32xbf16> to vector<8x32xbf16>
    %157 = vector.shape_cast %150 : vector<8x32xbf16> to vector<1x8x32xbf16>
    tpu.vector_store %arg6[%154, %c0_44, %c0_45], %157 {strides = array<i32>} : memref<8x8x32xbf16, #tpu.memory_space<vmem>>, vector<1x8x32xbf16>,
    %c4 = arith.constant 4 : index
    %c0_46 = arith.constant 0 : index
    %c0_47 = arith.constant 0 : index
    %158 = vector.load %arg4[%c4, %c0_46, %c0_47] : memref<7x8x128xf32, #tpu.memory_space<vmem>>, vector<1x8x128xf32>
    %159 = vector.shape_cast %158 : vector<1x8x128xf32> to vector<8x128xf32>
    %160 = arith.truncf %149 : vector<8x32xf32> to vector<8x32xbf16>
    %cst_48 = arith.constant dense<0.000000e+00> : vector<8x128xf32>
    %161 = tpu.matmul %160, %3, %cst_48 {dimension_numbers = #tpu.dot_dimension_numbers<[1], [0], [0], [1], [0, 0, 1, 1], [], []>} : vector<8x32xbf16>, vector<32x128xbf16>, vector<8x128xf32> -> vector<8x128xf32>
    %162 = arith.addf %159, %161 : vector<8x128xf32>
    %163 = vector.extract_strided_slice %162 {offsets = [0, 0], sizes = [8, 32], strides = [1, 1]} : vector<8x128xf32> to vector<8x32xf32>
    %164 = arith.negf %163 : vector<8x32xf32>
    %165 = math.exp %164 : vector<8x32xf32>
    %cst_49 = arith.constant 1.000000e+00 : f32
    %166 = vector.broadcast %cst_49 : f32 to vector<8x32xf32>
    %167 = arith.addf %166, %165 : vector<8x32xf32>
    %168 = arith.divf %166, %167 : vector<8x32xf32>
    %169 = vector.extract_strided_slice %162 {offsets = [0, 32], sizes = [8, 32], strides = [1, 1]} : vector<8x128xf32> to vector<8x32xf32>
    %170 = arith.negf %169 : vector<8x32xf32>
    %171 = math.exp %170 : vector<8x32xf32>
    %cst_50 = arith.constant 1.000000e+00 : f32
    %172 = vector.broadcast %cst_50 : f32 to vector<8x32xf32>
    %173 = arith.addf %172, %171 : vector<8x32xf32>
    %174 = arith.divf %172, %173 : vector<8x32xf32>
    %175 = vector.extract_strided_slice %162 {offsets = [0, 64], sizes = [8, 32], strides = [1, 1]} : vector<8x128xf32> to vector<8x32xf32>
    %176 = math.tanh %175 : vector<8x32xf32>
    %177 = vector.extract_strided_slice %162 {offsets = [0, 96], sizes = [8, 32], strides = [1, 1]} : vector<8x128xf32> to vector<8x32xf32>
    %178 = arith.negf %177 : vector<8x32xf32>
    %179 = math.exp %178 : vector<8x32xf32>
    %cst_51 = arith.constant 1.000000e+00 : f32
    %180 = vector.broadcast %cst_51 : f32 to vector<8x32xf32>
    %181 = arith.addf %180, %179 : vector<8x32xf32>
    %182 = arith.divf %180, %181 : vector<8x32xf32>
    %183 = arith.mulf %174, %147 : vector<8x32xf32>
    %184 = arith.mulf %168, %176 : vector<8x32xf32>
    %185 = arith.addf %183, %184 : vector<8x32xf32>
    %186 = math.tanh %185 : vector<8x32xf32>
    %187 = arith.mulf %182, %186 : vector<8x32xf32>
    %188 = arith.truncf %187 : vector<8x32xf32> to vector<8x32xbf16>
    %c7_i32_52 = arith.constant 7 : i32
    %189 = arith.muli %arg1, %c7_i32_52 : i32
    %c1_i32_53 = arith.constant 1 : i32
    %190 = arith.addi %c1_i32_53, %189 : i32
    %c4_i32 = arith.constant 4 : i32
    %191 = arith.addi %190, %c4_i32 : i32
    %192 = arith.index_cast %191 : i32 to index
    %c0_54 = arith.constant 0 : index
    %c0_55 = arith.constant 0 : index
    %193 = vector.load %arg6[%192, %c0_54, %c0_55] : memref<8x8x32xbf16, #tpu.memory_space<vmem>>, vector<1x8x32xbf16>
    %194 = vector.shape_cast %193 : vector<1x8x32xbf16> to vector<8x32xbf16>
    %195 = vector.shape_cast %188 : vector<8x32xbf16> to vector<1x8x32xbf16>
    tpu.vector_store %arg6[%192, %c0_54, %c0_55], %195 {strides = array<i32>} : memref<8x8x32xbf16, #tpu.memory_space<vmem>>, vector<1x8x32xbf16>,
    %c5 = arith.constant 5 : index
    %c0_56 = arith.constant 0 : index
    %c0_57 = arith.constant 0 : index
    %196 = vector.load %arg4[%c5, %c0_56, %c0_57] : memref<7x8x128xf32, #tpu.memory_space<vmem>>, vector<1x8x128xf32>
    %197 = vector.shape_cast %196 : vector<1x8x128xf32> to vector<8x128xf32>
    %198 = arith.truncf %187 : vector<8x32xf32> to vector<8x32xbf16>
    %cst_58 = arith.constant dense<0.000000e+00> : vector<8x128xf32>
    %199 = tpu.matmul %198, %3, %cst_58 {dimension_numbers = #tpu.dot_dimension_numbers<[1], [0], [0], [1], [0, 0, 1, 1], [], []>} : vector<8x32xbf16>, vector<32x128xbf16>, vector<8x128xf32> -> vector<8x128xf32>
    %200 = arith.addf %197, %199 : vector<8x128xf32>
    %201 = vector.extract_strided_slice %200 {offsets = [0, 0], sizes = [8, 32], strides = [1, 1]} : vector<8x128xf32> to vector<8x32xf32>
    %202 = arith.negf %201 : vector<8x32xf32>
    %203 = math.exp %202 : vector<8x32xf32>
    %cst_59 = arith.constant 1.000000e+00 : f32
    %204 = vector.broadcast %cst_59 : f32 to vector<8x32xf32>
    %205 = arith.addf %204, %203 : vector<8x32xf32>
    %206 = arith.divf %204, %205 : vector<8x32xf32>
    %207 = vector.extract_strided_slice %200 {offsets = [0, 32], sizes = [8, 32], strides = [1, 1]} : vector<8x128xf32> to vector<8x32xf32>
    %208 = arith.negf %207 : vector<8x32xf32>
    %209 = math.exp %208 : vector<8x32xf32>
    %cst_60 = arith.constant 1.000000e+00 : f32
    %210 = vector.broadcast %cst_60 : f32 to vector<8x32xf32>
    %211 = arith.addf %210, %209 : vector<8x32xf32>
    %212 = arith.divf %210, %211 : vector<8x32xf32>
    %213 = vector.extract_strided_slice %200 {offsets = [0, 64], sizes = [8, 32], strides = [1, 1]} : vector<8x128xf32> to vector<8x32xf32>
    %214 = math.tanh %213 : vector<8x32xf32>
    %215 = vector.extract_strided_slice %200 {offsets = [0, 96], sizes = [8, 32], strides = [1, 1]} : vector<8x128xf32> to vector<8x32xf32>
    %216 = arith.negf %215 : vector<8x32xf32>
    %217 = math.exp %216 : vector<8x32xf32>
    %cst_61 = arith.constant 1.000000e+00 : f32
    %218 = vector.broadcast %cst_61 : f32 to vector<8x32xf32>
    %219 = arith.addf %218, %217 : vector<8x32xf32>
    %220 = arith.divf %218, %219 : vector<8x32xf32>
    %221 = arith.mulf %212, %185 : vector<8x32xf32>
    %222 = arith.mulf %206, %214 : vector<8x32xf32>
    %223 = arith.addf %221, %222 : vector<8x32xf32>
    %224 = math.tanh %223 : vector<8x32xf32>
    %225 = arith.mulf %220, %224 : vector<8x32xf32>
    %226 = arith.truncf %225 : vector<8x32xf32> to vector<8x32xbf16>
    %c7_i32_62 = arith.constant 7 : i32
    %227 = arith.muli %arg1, %c7_i32_62 : i32
    %c1_i32_63 = arith.constant 1 : i32
    %228 = arith.addi %c1_i32_63, %227 : i32
    %c5_i32 = arith.constant 5 : i32
    %229 = arith.addi %228, %c5_i32 : i32
    %230 = arith.index_cast %229 : i32 to index
    %c0_64 = arith.constant 0 : index
    %c0_65 = arith.constant 0 : index
    %231 = vector.load %arg6[%230, %c0_64, %c0_65] : memref<8x8x32xbf16, #tpu.memory_space<vmem>>, vector<1x8x32xbf16>
    %232 = vector.shape_cast %231 : vector<1x8x32xbf16> to vector<8x32xbf16>
    %233 = vector.shape_cast %226 : vector<8x32xbf16> to vector<1x8x32xbf16>
    tpu.vector_store %arg6[%230, %c0_64, %c0_65], %233 {strides = array<i32>} : memref<8x8x32xbf16, #tpu.memory_space<vmem>>, vector<1x8x32xbf16>,
    %c6 = arith.constant 6 : index
    %c0_66 = arith.constant 0 : index
    %c0_67 = arith.constant 0 : index
    %234 = vector.load %arg4[%c6, %c0_66, %c0_67] : memref<7x8x128xf32, #tpu.memory_space<vmem>>, vector<1x8x128xf32>
    %235 = vector.shape_cast %234 : vector<1x8x128xf32> to vector<8x128xf32>
    %236 = arith.truncf %225 : vector<8x32xf32> to vector<8x32xbf16>
    %cst_68 = arith.constant dense<0.000000e+00> : vector<8x128xf32>
    %237 = tpu.matmul %236, %3, %cst_68 {dimension_numbers = #tpu.dot_dimension_numbers<[1], [0], [0], [1], [0, 0, 1, 1], [], []>} : vector<8x32xbf16>, vector<32x128xbf16>, vector<8x128xf32> -> vector<8x128xf32>
    %238 = arith.addf %235, %237 : vector<8x128xf32>
    %239 = vector.extract_strided_slice %238 {offsets = [0, 0], sizes = [8, 32], strides = [1, 1]} : vector<8x128xf32> to vector<8x32xf32>
    %240 = arith.negf %239 : vector<8x32xf32>
    %241 = math.exp %240 : vector<8x32xf32>
    %cst_69 = arith.constant 1.000000e+00 : f32
    %242 = vector.broadcast %cst_69 : f32 to vector<8x32xf32>
    %243 = arith.addf %242, %241 : vector<8x32xf32>
    %244 = arith.divf %242, %243 : vector<8x32xf32>
    %245 = vector.extract_strided_slice %238 {offsets = [0, 32], sizes = [8, 32], strides = [1, 1]} : vector<8x128xf32> to vector<8x32xf32>
    %246 = arith.negf %245 : vector<8x32xf32>
    %247 = math.exp %246 : vector<8x32xf32>
    %cst_70 = arith.constant 1.000000e+00 : f32
    %248 = vector.broadcast %cst_70 : f32 to vector<8x32xf32>
    %249 = arith.addf %248, %247 : vector<8x32xf32>
    %250 = arith.divf %248, %249 : vector<8x32xf32>
    %251 = vector.extract_strided_slice %238 {offsets = [0, 64], sizes = [8, 32], strides = [1, 1]} : vector<8x128xf32> to vector<8x32xf32>
    %252 = math.tanh %251 : vector<8x32xf32>
    %253 = vector.extract_strided_slice %238 {offsets = [0, 96], sizes = [8, 32], strides = [1, 1]} : vector<8x128xf32> to vector<8x32xf32>
    %254 = arith.negf %253 : vector<8x32xf32>
    %255 = math.exp %254 : vector<8x32xf32>
    %cst_71 = arith.constant 1.000000e+00 : f32
    %256 = vector.broadcast %cst_71 : f32 to vector<8x32xf32>
    %257 = arith.addf %256, %255 : vector<8x32xf32>
    %258 = arith.divf %256, %257 : vector<8x32xf32>
    %259 = arith.mulf %250, %223 : vector<8x32xf32>
    %260 = arith.mulf %244, %252 : vector<8x32xf32>
    %261 = arith.addf %259, %260 : vector<8x32xf32>
    %262 = math.tanh %261 : vector<8x32xf32>
    %263 = arith.mulf %258, %262 : vector<8x32xf32>
    %264 = arith.truncf %263 : vector<8x32xf32> to vector<8x32xbf16>
    %c7_i32_72 = arith.constant 7 : i32
    %265 = arith.muli %arg1, %c7_i32_72 : i32
    %c1_i32_73 = arith.constant 1 : i32
    %266 = arith.addi %c1_i32_73, %265 : i32
    %c6_i32 = arith.constant 6 : i32
    %267 = arith.addi %266, %c6_i32 : i32
    %268 = arith.index_cast %267 : i32 to index
    %c0_74 = arith.constant 0 : index
    %c0_75 = arith.constant 0 : index
    %269 = vector.load %arg6[%268, %c0_74, %c0_75] : memref<8x8x32xbf16, #tpu.memory_space<vmem>>, vector<1x8x32xbf16>
    %270 = vector.shape_cast %269 : vector<1x8x32xbf16> to vector<8x32xbf16>
    %271 = vector.shape_cast %264 : vector<8x32xbf16> to vector<1x8x32xbf16>
    tpu.vector_store %arg6[%268, %c0_74, %c0_75], %271 {strides = array<i32>} : memref<8x8x32xbf16, #tpu.memory_space<vmem>>, vector<1x8x32xbf16>,
    %c0_76 = arith.constant 0 : index
    %c0_77 = arith.constant 0 : index
    %272 = vector.load %arg7[%c0_76, %c0_77] : memref<8x32xf32, #tpu.memory_space<vmem>>, vector<8x32xf32>
    tpu.vector_store %arg7[%c0_76, %c0_77], %263 {strides = array<i32>} : memref<8x32xf32, #tpu.memory_space<vmem>>, vector<8x32xf32>,
    %c0_78 = arith.constant 0 : index
    %c0_79 = arith.constant 0 : index
    %273 = vector.load %arg8[%c0_78, %c0_79] : memref<8x32xf32, #tpu.memory_space<vmem>>, vector<8x32xf32>
    tpu.vector_store %arg8[%c0_78, %c0_79], %261 {strides = array<i32>} : memref<8x32xf32, #tpu.memory_space<vmem>>, vector<8x32xf32>,
    return
  }
  func.func @transform_0(%arg0: i32, %arg1: i32) -> (i32, i32) {
    %c0_i32 = arith.constant 0 : i32
    %c0_i32_0 = arith.constant 0 : i32
    return %arg0, %c0_i32 : i32, i32
  }
  func.func @transform_1(%arg0: i32, %arg1: i32) -> (i32, i32) {
    %c0_i32 = arith.constant 0 : i32
    %c0_i32_0 = arith.constant 0 : i32
    return %arg0, %c0_i32 : i32, i32
  }
  func.func @transform_2(%arg0: i32, %arg1: i32) -> (i32, i32, i32) {
    %c0_i32 = arith.constant 0 : i32
    %c0_i32_0 = arith.constant 0 : i32
    return %arg1, %arg0, %c0_i32 : i32, i32, i32
  }
  func.func @transform_3(%arg0: i32, %arg1: i32) -> (i32, i32) {
    %c0_i32 = arith.constant 0 : i32
    %c0_i32_0 = arith.constant 0 : i32
    %c0_i32_1 = arith.constant 0 : i32
    return %c0_i32, %c0_i32_0 : i32, i32
  }
  func.func @transform_4(%arg0: i32, %arg1: i32) -> (i32, i32, i32) {
    %c0_i32 = arith.constant 0 : i32
    %c0_i32_0 = arith.constant 0 : i32
    %c0_i32_1 = arith.constant 0 : i32
    return %c0_i32, %arg0, %c0_i32_0 : i32, i32, i32
  }
}

module attributes {stable_mosaic.version = 11 : i64} {
  func.func @kernel(%arg0: i32, %arg1: i32, %arg2: memref<64x32xbf16, #tpu.memory_space<vmem>>, %arg3: memref<32x16xbf16, #tpu.memory_space<vmem>>, %arg4: memref<1x16xf32, #tpu.memory_space<vmem>>, %arg5: memref<64x16xf32, #tpu.memory_space<vmem>>) attributes {dimension_semantics = [#tpu.dimension_semantics<parallel>, #tpu.dimension_semantics<arbitrary>], iteration_bounds = array<i64: 1, 1>, scalar_prefetch = 0 : i64, scratch_operands = 0 : i64, tpu.core_type = #tpu.core_type<tc>, window_params = [{transform_indices = @transform_0, window_bounds = array<i64: 64, 32>}, {transform_indices = @transform_1, window_bounds = array<i64: 32, 16>}, {transform_indices = @transform_2, window_bounds = array<i64: 1, 16>}, {transform_indices = @transform_3, window_bounds = array<i64: 64, 16>}]} {
    %c0 = arith.constant 0 : index
    %c0_0 = arith.constant 0 : index
    %0 = vector.load %arg2[%c0, %c0_0] : memref<64x32xbf16, #tpu.memory_space<vmem>>, vector<64x32xbf16>
    %c0_1 = arith.constant 0 : index
    %c0_2 = arith.constant 0 : index
    %1 = vector.load %arg3[%c0_1, %c0_2] : memref<32x16xbf16, #tpu.memory_space<vmem>>, vector<32x16xbf16>
    %cst = arith.constant dense<0.000000e+00> : vector<64x16xf32>
    %2 = tpu.matmul %0, %1, %cst {dimension_numbers = #tpu.dot_dimension_numbers<[1], [0], [0], [1], [0, 0, 1, 1], [], []>} : vector<64x32xbf16>, vector<32x16xbf16>, vector<64x16xf32> -> vector<64x16xf32>
    %c0_3 = arith.constant 0 : index
    %c0_4 = arith.constant 0 : index
    %3 = vector.load %arg4[%c0_3, %c0_4] : memref<1x16xf32, #tpu.memory_space<vmem>>, vector<1x16xf32>
    %4 = vector.broadcast %3 : vector<1x16xf32> to vector<64x16xf32>
    %5 = arith.addf %2, %4 : vector<64x16xf32>
    %c64_i32 = arith.constant 64 : i32
    %6 = arith.muli %arg1, %c64_i32 : i32
    %7 = tpu.iota {dimensions = array<i32: 0>} : vector<64x16xi32>
    %8 = vector.broadcast %6 : i32 to vector<64x16xi32>
    %9 = arith.addi %8, %7 : vector<64x16xi32>
    %c8_i32 = arith.constant 8 : i32
    %10 = vector.broadcast %c8_i32 : i32 to vector<64x16xi32>
    %11 = arith.cmpi slt, %9, %10 : vector<64x16xi32>
    %cst_5 = arith.constant 0.000000e+00 : f32
    %12 = vector.broadcast %cst_5 : f32 to vector<64x16xf32>
    %13 = arith.select %11, %12, %5 : vector<64x16xi1>, vector<64x16xf32>
    %c0_6 = arith.constant 0 : index
    %c0_7 = arith.constant 0 : index
    %14 = vector.load %arg5[%c0_6, %c0_7] : memref<64x16xf32, #tpu.memory_space<vmem>>, vector<64x16xf32>
    tpu.vector_store %arg5[%c0_6, %c0_7], %13 {strides = array<i32>} : memref<64x16xf32, #tpu.memory_space<vmem>>, vector<64x16xf32>,
    return
  }
  func.func @transform_0(%arg0: i32, %arg1: i32) -> (i32, i32) {
    %c0_i32 = arith.constant 0 : i32
    %c0_i32_0 = arith.constant 0 : i32
    return %arg1, %c0_i32 : i32, i32
  }
  func.func @transform_1(%arg0: i32, %arg1: i32) -> (i32, i32) {
    %c0_i32 = arith.constant 0 : i32
    %c0_i32_0 = arith.constant 0 : i32
    return %c0_i32, %arg0 : i32, i32
  }
  func.func @transform_2(%arg0: i32, %arg1: i32) -> (i32, i32) {
    %c0_i32 = arith.constant 0 : i32
    %c0_i32_0 = arith.constant 0 : i32
    return %c0_i32, %arg0 : i32, i32
  }
  func.func @transform_3(%arg0: i32, %arg1: i32) -> (i32, i32) {
    %c0_i32 = arith.constant 0 : i32
    return %arg1, %arg0 : i32, i32
  }
}

</mosaic_0001>

<llo_original>
// kernel: seq2seq_forward.6
$region0: #{seq2seq_forward.6}
  #allocation0 [shape = 'u32[]', space=smem, size = 0x4, offset = 0x4, fixed_abs, tag = 'smem constant byte address 0x4 - core index']
  #allocation1 [shape = 'u32[144,128]{1,0:T(1,128)}', space=vmem, size = 0x12000, scoped, tag = 'internal scratch']
  %s0 = inlined_call_operand.vmem [shape: bf16[56,32], index: 0, kind: input, shape index: {}]
  %s1 = inlined_call_operand.vmem [shape: bf16[32,128], index: 1, kind: input, shape index: {}]
  %s2 = inlined_call_operand.vmem [shape: f32[1,128], index: 2, kind: input, shape index: {}]
  %s3 = inlined_call_operand.vmem [shape: f32[56,128], index: 3, kind: output, shape index: {}]
  %s4 = sld [smem:[#allocation0]]
  $region22: #{seq2seq_forward.6} parent=0
    _
  %s6 = ssub.s32 1, %s4
  %s7 = scalar_select 0, %s6, %s4
  // Predicated region
  $region2: #{seq2seq_forward.6} parent=0 // pred_check
    _
  $region3: #{seq2seq_forward.6} parent=0 // pred_check_branch
    %9 = sbr.rel (0) target = $region5
  $region4: #{seq2seq_forward.6} parent=0 // pred_region
    _
  $region5: #{seq2seq_forward.6} parent=0 // pred_fallthru
    _
  // Predicated region
  $region6: #{seq2seq_forward.6} parent=0 // pred_check
    _
  $region7: #{seq2seq_forward.6} parent=0 // pred_check_branch
    %11 = sbr.rel (0) target = $region9
  $region8: #{seq2seq_forward.6} parent=0 // pred_region
    _
  $region9: #{seq2seq_forward.6} parent=0 // pred_fallthru
    _
  // Predicated region
  $region10: #{seq2seq_forward.6} parent=0 // pred_check
    _
  $region11: #{seq2seq_forward.6} parent=0 // pred_check_branch
    %13 = sbr.rel (0) target = $region13
  $region12: #{seq2seq_forward.6} parent=0 // pred_region
    _
  $region13: #{seq2seq_forward.6} parent=0 // pred_fallthru
    _
  %v15 = vld [vmem:[%s0] sm:$0xf]
  %v16 = vld [vmem:[%s0 + $0x4] sm:$0xf]
  %v17 = vld [vmem:[%s0 + $0x8] sm:$0xf]
  %v18 = vld [vmem:[%s0 + $0xc] sm:$0xf]
  %v19 = vld [vmem:[%s0 + $0x10] sm:$0xf]
  %v20 = vld [vmem:[%s0 + $0x14] sm:$0xf]
  %v21 = vld [vmem:[%s0 + $0x18] sm:$0xf]
  %v22 = vld [vmem:[%s1] sm:$0xf]
  %v23 = vld [vmem:[%s1 + $0x4] sm:$0xf]
  %v24 = vld [vmem:[%s1 + $0x8] sm:$0xf]
  %v25 = vld [vmem:[%s1 + $0xc] sm:$0xf]
  %v26 = vld [vmem:[%s2] sm:$0x1]
  %v28 = vlaneseq
  %v29 = vshrl.u32 %v28, 7
  %v30 = vsub.s32 0, %v29
  %v31 = vrot.slane %v26, %v30
  %v40 = vunpack.c.l.b16 %v15
  %v41 = vunpack.c.l.b16 %v16
  %v42 = vunpack.c.l.b16 %v17
  %v43 = vunpack.c.l.b16 %v18
  %v44 = vunpack.c.l.b16 %v19
  %v45 = vunpack.c.l.b16 %v20
  %v46 = vunpack.c.l.b16 %v21
  %v47 = vpack.c.b16 %v41, %v40
  %v48 = vpack.c.b16 %v43, %v42
  %v49 = vpack.c.b16 %v45, %v44
  %v50 = vpack.c.b16 %v46, %v46
  %v55 = vunpack.c.l.b16 %v22
  %v56 = vunpack.c.l.b16 %v23
  %v57 = vunpack.c.l.b16 %v24
  %v58 = vunpack.c.l.b16 %v25
  %v59 = vpack.c.b16 %v56, %v55
  %v60 = vpack.c.b16 %v58, %v57
  %vm63 = vcmask 261120
  %v65 = vsel %vm63, %v47, 0
  %v68 = vsel %vm63, %v48, 0
  %v71 = vsel %vm63, %v49, 0
  %v74 = vsel %vm63, %v50, 0
  %76 = vmatprep.subr.bf16.mxu0 0
  %77 = vmatpush1.bf16.msra.mxu0 %v59
  %78 = vmatprep.subr.bf16.mxu0 0
  %79 = vmatpush1.bf16.msra.mxu0 %v60
  %80 = vmatprep.subr.bf16.mxu0 0
  %81 = vmatpush1.bf16.msra.mxu0 0
  %82 = vmatprep.subr.bf16.mxu0 0
  %83 = vmatpush1.bf16.msra.mxu0 0
  %84 = vmatprep.subr.bf16.mxu0 0
  %85 = vmatpush1.bf16.msra.mxu0 0
  %86 = vmatprep.subr.bf16.mxu0 0
  %87 = vmatpush1.bf16.msra.mxu0 0
  %88 = vmatprep.subr.bf16.mxu0 0
  %89 = vmatpush1.bf16.msra.mxu0 0
  %90 = vmatprep.subr.bf16.mxu0 0
  %91 = vmatpush1.bf16.msra.mxu0 0
  %92 = vmatprep.subr.bf16.mxu0 0
  %93 = vmatpush1.bf16.msra.mxu0 0
  %94 = vmatprep.subr.bf16.mxu0 0
  %95 = vmatpush1.bf16.msra.mxu0 0
  %96 = vmatprep.subr.bf16.mxu0 0
  %97 = vmatpush1.bf16.msra.mxu0 0
  %98 = vmatprep.subr.bf16.mxu0 0
  %99 = vmatpush1.bf16.msra.mxu0 0
  %100 = vmatprep.subr.bf16.mxu0 0
  %101 = vmatpush1.bf16.msra.mxu0 0
  %102 = vmatprep.subr.bf16.mxu0 0
  %103 = vmatpush1.bf16.msra.mxu0 0
  %104 = vmatprep.subr.bf16.mxu0 0
  %105 = vmatpush1.bf16.msra.mxu0 0
  %106 = vmatprep.subr.bf16.mxu0 0
  %107 = vmatpush1.bf16.msra.mxu0 0
  %108 = vmatprep.mubr.bf16.mxu0 0
  %109 = vmatmul.mubr.bf16.gmra.mrb[0].mxu0 %v65
  %v110 = vpop.f32.mrb[0].mxu0
  %v111 = vadd.f32 %v31, %v110
  %v112 = vpop.f32.mrb[0].mxu0
  %v113 = vpop.f32.mrb[0].mxu0
  %v114 = vadd.f32 %v31, %v113
  %v115 = vpop.f32.mrb[0].mxu0
  %116 = vmatprep.mubr.bf16.mxu0 0
  %117 = vmatmul.mubr.bf16.gmra.mrb[0].mxu0 %v68
  %v118 = vpop.f32.mrb[0].mxu0
  %v119 = vadd.f32 %v31, %v118
  %v120 = vpop.f32.mrb[0].mxu0
  %v121 = vpop.f32.mrb[0].mxu0
  %v122 = vadd.f32 %v31, %v121
  %v123 = vpop.f32.mrb[0].mxu0
  %124 = vmatprep.mubr.bf16.mxu0 0
  %125 = vmatmul.mubr.bf16.gmra.mrb[0].mxu0 %v71
  %v126 = vpop.f32.mrb[0].mxu0
  %v127 = vadd.f32 %v31, %v126
  %v128 = vpop.f32.mrb[0].mxu0
  %v129 = vpop.f32.mrb[0].mxu0
  %v130 = vadd.f32 %v31, %v129
  %v131 = vpop.f32.mrb[0].mxu0
  %132 = vmatprep.mubr.bf16.mxu0 0
  %133 = vmatmul.mubr.bf16.gmra.mrb[0].mxu0 %v74
  %v134 = vpop.f32.mrb[0].mxu0
  %v135 = vadd.f32 %v31, %v134
  %v136 = vpop.f32.mrb[0].mxu0
  %v137 = vpop.f32.mrb[0].mxu0
  %v138 = vpop.f32.mrb[0].mxu0
  %139 = vdwg.mxu0
  %140 = vst [vmem:[%s3] sm:$0xff] %v111
  %141 = vst [vmem:[%s3 + $0x8] sm:$0xff] %v114
  %142 = vst [vmem:[%s3 + $0x10] sm:$0xff] %v119
  %143 = vst [vmem:[%s3 + $0x18] sm:$0xff] %v122
  %144 = vst [vmem:[%s3 + $0x20] sm:$0xff] %v127
  %145 = vst [vmem:[%s3 + $0x28] sm:$0xff] %v130
  %146 = vst [vmem:[%s3 + $0x30] sm:$0xff] %v135
  // Predicated region
  $region14: #{seq2seq_forward.6} parent=0 // pred_check
    _
  $region15: #{seq2seq_forward.6} parent=0 // pred_check_branch
    %148 = sbr.rel (0) target = $region17
  $region16: #{seq2seq_forward.6} parent=0 // pred_region
    _
  $region17: #{seq2seq_forward.6} parent=0 // pred_fallthru
    _
  // Predicated region
  $region18: #{seq2seq_forward.6} parent=0 // pred_check
    _
  $region19: #{seq2seq_forward.6} parent=0 // pred_check_branch
    %150 = sbr.rel (0) target = $region21
  $region20: #{seq2seq_forward.6} parent=0 // pred_region
    _
  $region21: #{seq2seq_forward.6} parent=0 // pred_fallthru
    _

// kernel: seq2seq_forward.5
$region0: #{seq2seq_forward.5}
  #allocation0 [shape = 'u32[]', space=smem, size = 0x4, offset = 0x4, fixed_abs, tag = 'smem constant byte address 0x4 - core index']
  #allocation1 [shape = 'u32[144,128]{1,0:T(1,128)}', space=vmem, size = 0x12000, scoped, tag = 'internal scratch']
  %s0 = inlined_call_operand.vmem [shape: bf16[64,32], index: 0, kind: input, shape index: {}]
  %s1 = inlined_call_operand.vmem [shape: bf16[32,128], index: 1, kind: input, shape index: {}]
  %s2 = inlined_call_operand.vmem [shape: f32[1,128], index: 2, kind: input, shape index: {}]
  %s3 = inlined_call_operand.vmem [shape: f32[64,128], index: 3, kind: output, shape index: {}]
  %s4 = sld [smem:[#allocation0]]
  $region22: #{seq2seq_forward.5} parent=0
    _
  %s6 = ssub.s32 1, %s4
  %s7 = scalar_select 0, %s6, %s4
  // Predicated region
  $region2: #{seq2seq_forward.5} parent=0 // pred_check
    _
  $region3: #{seq2seq_forward.5} parent=0 // pred_check_branch
    %9 = sbr.rel (0) target = $region5
  $region4: #{seq2seq_forward.5} parent=0 // pred_region
    _
  $region5: #{seq2seq_forward.5} parent=0 // pred_fallthru
    _
  // Predicated region
  $region6: #{seq2seq_forward.5} parent=0 // pred_check
    _
  $region7: #{seq2seq_forward.5} parent=0 // pred_check_branch
    %11 = sbr.rel (0) target = $region9
  $region8: #{seq2seq_forward.5} parent=0 // pred_region
    _
  $region9: #{seq2seq_forward.5} parent=0 // pred_fallthru
    _
  // Predicated region
  $region10: #{seq2seq_forward.5} parent=0 // pred_check
    _
  $region11: #{seq2seq_forward.5} parent=0 // pred_check_branch
    %13 = sbr.rel (0) target = $region13
  $region12: #{seq2seq_forward.5} parent=0 // pred_region
    _
  $region13: #{seq2seq_forward.5} parent=0 // pred_fallthru
    _
  %v15 = vld [vmem:[%s0] sm:$0xf]
  %v16 = vld [vmem:[%s0 + $0x4] sm:$0xf]
  %v17 = vld [vmem:[%s0 + $0x8] sm:$0xf]
  %v18 = vld [vmem:[%s0 + $0xc] sm:$0xf]
  %v19 = vld [vmem:[%s0 + $0x10] sm:$0xf]
  %v20 = vld [vmem:[%s0 + $0x14] sm:$0xf]
  %v21 = vld [vmem:[%s0 + $0x18] sm:$0xf]
  %v22 = vld [vmem:[%s0 + $0x1c] sm:$0xf]
  %v23 = vld [vmem:[%s1] sm:$0xf]
  %v24 = vld [vmem:[%s1 + $0x4] sm:$0xf]
  %v25 = vld [vmem:[%s1 + $0x8] sm:$0xf]
  %v26 = vld [vmem:[%s1 + $0xc] sm:$0xf]
  %v27 = vld [vmem:[%s2] sm:$0x1]
  %v29 = vlaneseq
  %v30 = vshrl.u32 %v29, 7
  %v31 = vsub.s32 0, %v30
  %v32 = vrot.slane %v27, %v31
  %v42 = vunpack.c.l.b16 %v15
  %v43 = vunpack.c.l.b16 %v16
  %v44 = vunpack.c.l.b16 %v17
  %v45 = vunpack.c.l.b16 %v18
  %v46 = vunpack.c.l.b16 %v19
  %v47 = vunpack.c.l.b16 %v20
  %v48 = vunpack.c.l.b16 %v21
  %v49 = vunpack.c.l.b16 %v22
  %v50 = vpack.c.b16 %v43, %v42
  %v51 = vpack.c.b16 %v45, %v44
  %v52 = vpack.c.b16 %v47, %v46
  %v53 = vpack.c.b16 %v49, %v48
  %v58 = vunpack.c.l.b16 %v23
  %v59 = vunpack.c.l.b16 %v24
  %v60 = vunpack.c.l.b16 %v25
  %v61 = vunpack.c.l.b16 %v26
  %v62 = vpack.c.b16 %v59, %v58
  %v63 = vpack.c.b16 %v61, %v60
  %vm66 = vcmask 261120
  %v68 = vsel %vm66, %v50, 0
  %v71 = vsel %vm66, %v51, 0
  %v74 = vsel %vm66, %v52, 0
  %v77 = vsel %vm66, %v53, 0
  %79 = vmatprep.subr.bf16.mxu0 0
  %80 = vmatpush1.bf16.msra.mxu0 %v62
  %81 = vmatprep.subr.bf16.mxu0 0
  %82 = vmatpush1.bf16.msra.mxu0 %v63
  %83 = vmatprep.subr.bf16.mxu0 0
  %84 = vmatpush1.bf16.msra.mxu0 0
  %85 = vmatprep.subr.bf16.mxu0 0
  %86 = vmatpush1.bf16.msra.mxu0 0
  %87 = vmatprep.subr.bf16.mxu0 0
  %88 = vmatpush1.bf16.msra.mxu0 0
  %89 = vmatprep.subr.bf16.mxu0 0
  %90 = vmatpush1.bf16.msra.mxu0 0
  %91 = vmatprep.subr.bf16.mxu0 0
  %92 = vmatpush1.bf16.msra.mxu0 0
  %93 = vmatprep.subr.bf16.mxu0 0
  %94 = vmatpush1.bf16.msra.mxu0 0
  %95 = vmatprep.subr.bf16.mxu0 0
  %96 = vmatpush1.bf16.msra.mxu0 0
  %97 = vmatprep.subr.bf16.mxu0 0
  %98 = vmatpush1.bf16.msra.mxu0 0
  %99 = vmatprep.subr.bf16.mxu0 0
  %100 = vmatpush1.bf16.msra.mxu0 0
  %101 = vmatprep.subr.bf16.mxu0 0
  %102 = vmatpush1.bf16.msra.mxu0 0
  %103 = vmatprep.subr.bf16.mxu0 0
  %104 = vmatpush1.bf16.msra.mxu0 0
  %105 = vmatprep.subr.bf16.mxu0 0
  %106 = vmatpush1.bf16.msra.mxu0 0
  %107 = vmatprep.subr.bf16.mxu0 0
  %108 = vmatpush1.bf16.msra.mxu0 0
  %109 = vmatprep.subr.bf16.mxu0 0
  %110 = vmatpush1.bf16.msra.mxu0 0
  %111 = vmatprep.mubr.bf16.mxu0 0
  %112 = vmatmul.mubr.bf16.gmra.mrb[0].mxu0 %v68
  %v113 = vpop.f32.mrb[0].mxu0
  %v114 = vadd.f32 %v32, %v113
  %v115 = vpop.f32.mrb[0].mxu0
  %v116 = vpop.f32.mrb[0].mxu0
  %v117 = vadd.f32 %v32, %v116
  %v118 = vpop.f32.mrb[0].mxu0
  %119 = vmatprep.mubr.bf16.mxu0 0
  %120 = vmatmul.mubr.bf16.gmra.mrb[0].mxu0 %v71
  %v121 = vpop.f32.mrb[0].mxu0
  %v122 = vadd.f32 %v32, %v121
  %v123 = vpop.f32.mrb[0].mxu0
  %v124 = vpop.f32.mrb[0].mxu0
  %v125 = vadd.f32 %v32, %v124
  %v126 = vpop.f32.mrb[0].mxu0
  %127 = vmatprep.mubr.bf16.mxu0 0
  %128 = vmatmul.mubr.bf16.gmra.mrb[0].mxu0 %v74
  %v129 = vpop.f32.mrb[0].mxu0
  %v130 = vadd.f32 %v32, %v129
  %v131 = vpop.f32.mrb[0].mxu0
  %v132 = vpop.f32.mrb[0].mxu0
  %v133 = vadd.f32 %v32, %v132
  %v134 = vpop.f32.mrb[0].mxu0
  %135 = vmatprep.mubr.bf16.mxu0 0
  %136 = vmatmul.mubr.bf16.gmra.mrb[0].mxu0 %v77
  %v137 = vpop.f32.mrb[0].mxu0
  %v138 = vadd.f32 %v32, %v137
  %v139 = vpop.f32.mrb[0].mxu0
  %v140 = vpop.f32.mrb[0].mxu0
  %v141 = vadd.f32 %v32, %v140
  %v142 = vpop.f32.mrb[0].mxu0
  %143 = vdwg.mxu0
  %144 = vst [vmem:[%s3] sm:$0xff] %v114
  %145 = vst [vmem:[%s3 + $0x8] sm:$0xff] %v117
  %146 = vst [vmem:[%s3 + $0x10] sm:$0xff] %v122
  %147 = vst [vmem:[%s3 + $0x18] sm:$0xff] %v125
  %148 = vst [vmem:[%s3 + $0x20] sm:$0xff] %v130
  %149 = vst [vmem:[%s3 + $0x28] sm:$0xff] %v133
  %150 = vst [vmem:[%s3 + $0x30] sm:$0xff] %v138
  %151 = vst [vmem:[%s3 + $0x38] sm:$0xff] %v141
  // Predicated region
  $region14: #{seq2seq_forward.5} parent=0 // pred_check
    _
  $region15: #{seq2seq_forward.5} parent=0 // pred_check_branch
    %153 = sbr.rel (0) target = $region17
  $region16: #{seq2seq_forward.5} parent=0 // pred_region
    _
  $region17: #{seq2seq_forward.5} parent=0 // pred_fallthru
    _
  // Predicated region
  $region18: #{seq2seq_forward.5} parent=0 // pred_check
    _
  $region19: #{seq2seq_forward.5} parent=0 // pred_check_branch
    %155 = sbr.rel (0) target = $region21
  $region20: #{seq2seq_forward.5} parent=0 // pred_region
    _
  $region21: #{seq2seq_forward.5} parent=0 // pred_fallthru
    _

// kernel: seq2seq_forward.7
$region0: #{seq2seq_forward.7}
  #allocation0 [shape = 'u32[]', space=smem, size = 0x4, offset = 0x4, fixed_abs, tag = 'smem constant byte address 0x4 - core index']
  #allocation1 [shape = 'u32[144,128]{1,0:T(1,128)}', space=vmem, size = 0x12000, scoped, tag = 'internal scratch']
  %s0 = inlined_call_operand.vmem [shape: f32[8,8,128], index: 0, kind: input, shape index: {}]
  %s1 = inlined_call_operand.vmem [shape: bf16[32,128], index: 1, kind: input, shape index: {}]
  %s2 = inlined_call_operand.vmem [shape: f32[8,32], index: 2, kind: output, shape index: {0}]
  %s3 = inlined_call_operand.vmem [shape: f32[8,32], index: 3, kind: output, shape index: {1}]
  %4 = xla_tuple %s2, %s3
  %s5 = sld [smem:[#allocation0]]
  $region30: #{seq2seq_forward.7} parent=0
    _
  %s7 = ssub.s32 1, %s5
  %s8 = scalar_select 0, %s7, %s5
  // Predicated region
  $region2: #{seq2seq_forward.7} parent=0 // pred_check
    _
  $region3: #{seq2seq_forward.7} parent=0 // pred_check_branch
    %10 = sbr.rel (0) target = $region5
  $region4: #{seq2seq_forward.7} parent=0 // pred_region
    _
  $region5: #{seq2seq_forward.7} parent=0 // pred_fallthru
    _
  // Predicated region
  $region6: #{seq2seq_forward.7} parent=0 // pred_check
    _
  $region7: #{seq2seq_forward.7} parent=0 // pred_check_branch
    %12 = sbr.rel (0) target = $region9
  $region8: #{seq2seq_forward.7} parent=0 // pred_region
    _
  $region9: #{seq2seq_forward.7} parent=0 // pred_fallthru
    _
  %p14 = scmp.eq.s32.totalorder 0, 0
  // Predicated region
  $region10: #{seq2seq_forward.7} parent=0 // pred_check
    %p15 = pneg %p14
  $region11: #{seq2seq_forward.7} parent=0 // pred_check_branch
    %17 = sbr.rel (%p15) target = $region13
  $region12: #{seq2seq_forward.7} parent=0 // pred_region
    %vm18 = vcmask 261120
    %19 = vst.msk [vmem:[%s2] sm:$0xff] %vm18, 0.0
    %20 = vst.msk [vmem:[%s3] sm:$0xff] %vm18, 0.0
  $region13: #{seq2seq_forward.7} parent=0 // pred_fallthru
    _
  %v21 = vld [vmem:[%s1] sm:$0xf]
  %v22 = vld [vmem:[%s1 + $0x4] sm:$0xf]
  %v23 = vld [vmem:[%s1 + $0x8] sm:$0xf]
  %v24 = vld [vmem:[%s1 + $0xc] sm:$0xf]
  %v25 = vld [vmem:[%s2] sm:$0xff]
  %v26 = vld [vmem:[%s3] sm:$0xff]
  %v27 = vld [vmem:[%s0] sm:$0xff]
  %v28 = vpack.c.bf16 %v25, %v25
  %v33 = vunpack.c.l.b16 %v21
  %v34 = vunpack.c.l.b16 %v22
  %v35 = vunpack.c.l.b16 %v23
  %v36 = vunpack.c.l.b16 %v24
  %v37 = vpack.c.b16 %v34, %v33
  %v38 = vpack.c.b16 %v36, %v35
  %vm41 = vcmask 261120
  %v43 = vsel %vm41, %v28, 0
  %45 = vmatprep.subr.bf16.mxu0 0
  %46 = vmatpush1.bf16.msra.mxu0 %v37
  %47 = vmatprep.subr.bf16.mxu0 0
  %48 = vmatpush1.bf16.msra.mxu0 %v38
  %49 = vmatprep.subr.bf16.mxu0 0
  %50 = vmatpush1.bf16.msra.mxu0 0
  %51 = vmatprep.subr.bf16.mxu0 0
  %52 = vmatpush1.bf16.msra.mxu0 0
  %53 = vmatprep.subr.bf16.mxu0 0
  %54 = vmatpush1.bf16.msra.mxu0 0
  %55 = vmatprep.subr.bf16.mxu0 0
  %56 = vmatpush1.bf16.msra.mxu0 0
  %57 = vmatprep.subr.bf16.mxu0 0
  %58 = vmatpush1.bf16.msra.mxu0 0
  %59 = vmatprep.subr.bf16.mxu0 0
  %60 = vmatpush1.bf16.msra.mxu0 0
  %61 = vmatprep.subr.bf16.mxu0 0
  %62 = vmatpush1.bf16.msra.mxu0 0
  %63 = vmatprep.subr.bf16.mxu0 0
  %64 = vmatpush1.bf16.msra.mxu0 0
  %65 = vmatprep.subr.bf16.mxu0 0
  %66 = vmatpush1.bf16.msra.mxu0 0
  %67 = vmatprep.subr.bf16.mxu0 0
  %68 = vmatpush1.bf16.msra.mxu0 0
  %69 = vmatprep.subr.bf16.mxu0 0
  %70 = vmatpush1.bf16.msra.mxu0 0
  %71 = vmatprep.subr.bf16.mxu0 0
  %72 = vmatpush1.bf16.msra.mxu0 0
  %73 = vmatprep.subr.bf16.mxu0 0
  %74 = vmatpush1.bf16.msra.mxu0 0
  %75 = vmatprep.subr.bf16.mxu0 0
  %76 = vmatpush1.bf16.msra.mxu0 0
  %77 = vmatprep.mubr.bf16.mxu0 0
  %78 = vmatmul.mubr.bf16.gmra.mrb[0].mxu0 %v43
  %v79 = vpop.f32.mrb[0].mxu0
  %v80 = vadd.f32 0.0, %v79
  %v81 = vpop.f32.mrb[0].mxu0
  %v82 = vpop.f32.mrb[0].mxu0
  %v83 = vpop.f32.mrb[0].mxu0
  %84 = vdwg.mxu0
  %v85 = vadd.f32 %v27, %v80
  %v86 = vxor.u32 %v85, 2147483648
  %v87 = vmul.f32 %v86, 1.442695
  %v88 = vpow.pop %v87
  %v89 = vadd.f32 %v88, 1.0
  %v90 = vrcp.pop %v89
  %v91 = vmul.f32 1.0, %v90
  %v92 = vtanh.pop %v85
  %94 = vrot.lane.b32.xlu0 %v26, 32
  %v95 = vpop.permute.xlu0 %94
  %v97 = vmul.f32 %v91, %v95
  %99 = vrot.lane.b32.xlu0 %v92, 64
  %v100 = vpop.permute.xlu0 %99
  %v102 = vmul.f32 %v91, %v100
  %104 = vrot.lane.b32.xlu0 %v102, 32
  %v105 = vpop.permute.xlu0 %104
  %v107 = vadd.f32 %v97, %v105
  %v108 = vtanh.pop %v107
  %110 = vrot.lane.b32.xlu0 %v108, 64
  %v111 = vpop.permute.xlu0 %110
  %v113 = vmul.f32 %v91, %v111
  %s114 = scalar_lea.vmem %s0, 8
  %v115 = vld [vmem:[%s114] sm:$0xff]
  %v116 = vpack.c.bf16 %v113, %v113
  %118 = vrot.lane.b32.xlu0 %v116, 32
  %v119 = vpop.permute.xlu0 %118
  %v121 = vsel %vm41, %v119, 0
  %123 = vmatprep.subr.bf16.mxu0 0
  %124 = vmatpush1.bf16.msra.mxu0 %v37
  %125 = vmatprep.subr.bf16.mxu0 0
  %126 = vmatpush1.bf16.msra.mxu0 %v38
  %127 = vmatprep.subr.bf16.mxu0 0
  %128 = vmatpush1.bf16.msra.mxu0 0
  %129 = vmatprep.subr.bf16.mxu0 0
  %130 = vmatpush1.bf16.msra.mxu0 0
  %131 = vmatprep.subr.bf16.mxu0 0
  %132 = vmatpush1.bf16.msra.mxu0 0
  %133 = vmatprep.subr.bf16.mxu0 0
  %134 = vmatpush1.bf16.msra.mxu0 0
  %135 = vmatprep.subr.bf16.mxu0 0
  %136 = vmatpush1.bf16.msra.mxu0 0
  %137 = vmatprep.subr.bf16.mxu0 0
  %138 = vmatpush1.bf16.msra.mxu0 0
  %139 = vmatprep.subr.bf16.mxu0 0
  %140 = vmatpush1.bf16.msra.mxu0 0
  %141 = vmatprep.subr.bf16.mxu0 0
  %142 = vmatpush1.bf16.msra.mxu0 0
  %143 = vmatprep.subr.bf16.mxu0 0
  %144 = vmatpush1.bf16.msra.mxu0 0
  %145 = vmatprep.subr.bf16.mxu0 0
  %146 = vmatpush1.bf16.msra.mxu0 0
  %147 = vmatprep.subr.bf16.mxu0 0
  %148 = vmatpush1.bf16.msra.mxu0 0
  %149 = vmatprep.subr.bf16.mxu0 0
  %150 = vmatpush1.bf16.msra.mxu0 0
  %151 = vmatprep.subr.bf16.mxu0 0
  %152 = vmatpush1.bf16.msra.mxu0 0
  %153 = vmatprep.subr.bf16.mxu0 0
  %154 = vmatpush1.bf16.msra.mxu0 0
  %155 = vmatprep.mubr.bf16.mxu0 0
  %156 = vmatmul.mubr.bf16.gmra.mrb[0].mxu0 %v121
  %v157 = vpop.f32.mrb[0].mxu0
  %v158 = vadd.f32 0.0, %v157
  %v159 = vpop.f32.mrb[0].mxu0
  %v160 = vpop.f32.mrb[0].mxu0
  %v161 = vpop.f32.mrb[0].mxu0
  %162 = vdwg.mxu0
  %v163 = vadd.f32 %v115, %v158
  %v164 = vxor.u32 %v163, 2147483648
  %v165 = vmul.f32 %v164, 1.442695
  %v166 = vpow.pop %v165
  %v167 = vadd.f32 %v166, 1.0
  %v168 = vrcp.pop %v167
  %v169 = vmul.f32 1.0, %v168
  %v170 = vtanh.pop %v163
  %v171 = vmul.f32 %v169, %v107
  %173 = vrot.lane.b32.xlu0 %v170, 64
  %v174 = vpop.permute.xlu0 %173
  %v176 = vmul.f32 %v169, %v174
  %178 = vrot.lane.b32.xlu0 %v176, 32
  %v179 = vpop.permute.xlu0 %178
  %v181 = vadd.f32 %v171, %v179
  %v182 = vtanh.pop %v181
  %184 = vrot.lane.b32.xlu0 %v182, 64
  %v185 = vpop.permute.xlu0 %184
  %v187 = vmul.f32 %v169, %v185
  %s188 = scalar_lea.vmem %s0, 16
  %v189 = vld [vmem:[%s188] sm:$0xff]
  %v190 = vpack.c.bf16 %v187, %v187
  %192 = vrot.lane.b32.xlu0 %v190, 32
  %v193 = vpop.permute.xlu0 %192
  %v195 = vsel %vm41, %v193, 0
  %197 = vmatprep.subr.bf16.mxu0 0
  %198 = vmatpush1.bf16.msra.mxu0 %v37
  %199 = vmatprep.subr.bf16.mxu0 0
  %200 = vmatpush1.bf16.msra.mxu0 %v38
  %201 = vmatprep.subr.bf16.mxu0 0
  %202 = vmatpush1.bf16.msra.mxu0 0
  %203 = vmatprep.subr.bf16.mxu0 0
  %204 = vmatpush1.bf16.msra.mxu0 0
  %205 = vmatprep.subr.bf16.mxu0 0
  %206 = vmatpush1.bf16.msra.mxu0 0
  %207 = vmatprep.subr.bf16.mxu0 0
  %208 = vmatpush1.bf16.msra.mxu0 0
  %209 = vmatprep.subr.bf16.mxu0 0
  %210 = vmatpush1.bf16.msra.mxu0 0
  %211 = vmatprep.subr.bf16.mxu0 0
  %212 = vmatpush1.bf16.msra.mxu0 0
  %213 = vmatprep.subr.bf16.mxu0 0
  %214 = vmatpush1.bf16.msra.mxu0 0
  %215 = vmatprep.subr.bf16.mxu0 0
  %216 = vmatpush1.bf16.msra.mxu0 0
  %217 = vmatprep.subr.bf16.mxu0 0
  %218 = vmatpush1.bf16.msra.mxu0 0
  %219 = vmatprep.subr.bf16.mxu0 0
  %220 = vmatpush1.bf16.msra.mxu0 0
  %221 = vmatprep.subr.bf16.mxu0 0
  %222 = vmatpush1.bf16.msra.mxu0 0
  %223 = vmatprep.subr.bf16.mxu0 0
  %224 = vmatpush1.bf16.msra.mxu0 0
  %225 = vmatprep.subr.bf16.mxu0 0
  %226 = vmatpush1.bf16.msra.mxu0 0
  %227 = vmatprep.subr.bf16.mxu0 0
  %228 = vmatpush1.bf16.msra.mxu0 0
  %229 = vmatprep.mubr.bf16.mxu0 0
  %230 = vmatmul.mubr.bf16.gmra.mrb[0].mxu0 %v195
  %v231 = vpop.f32.mrb[0].mxu0
  %v232 = vadd.f32 0.0, %v231
  %v233 = vpop.f32.mrb[0].mxu0
  %v234 = vpop.f32.mrb[0].mxu0
  %v235 = vpop.f32.mrb[0].mxu0
  %236 = vdwg.mxu0
  %v237 = vadd.f32 %v189, %v232
  %v238 = vxor.u32 %v237, 2147483648
  %v239 = vmul.f32 %v238, 1.442695
  %v240 = vpow.pop %v239
  %v241 = vadd.f32 %v240, 1.0
  %v242 = vrcp.pop %v241
  %v243 = vmul.f32 1.0, %v242
  %v244 = vtanh.pop %v237
  %v245 = vmul.f32 %v243, %v181
  %247 = vrot.lane.b32.xlu0 %v244, 64
  %v248 = vpop.permute.xlu0 %247
  %v250 = vmul.f32 %v243, %v248
  %252 = vrot.lane.b32.xlu0 %v250, 32
  %v253 = vpop.permute.xlu0 %252
  %v255 = vadd.f32 %v245, %v253
  %v256 = vtanh.pop %v255
  %258 = vrot.lane.b32.xlu0 %v256, 64
  %v259 = vpop.permute.xlu0 %258
  %v261 = vmul.f32 %v243, %v259
  %s262 = scalar_lea.vmem %s0, 24
  %v263 = vld [vmem:[%s262] sm:$0xff]
  %v264 = vpack.c.bf16 %v261, %v261
  %266 = vrot.lane.b32.xlu0 %v264, 32
  %v267 = vpop.permute.xlu0 %266
  %v269 = vsel %vm41, %v267, 0
  %271 = vmatprep.subr.bf16.mxu0 0
  %272 = vmatpush1.bf16.msra.mxu0 %v37
  %273 = vmatprep.subr.bf16.mxu0 0
  %274 = vmatpush1.bf16.msra.mxu0 %v38
  %275 = vmatprep.subr.bf16.mxu0 0
  %276 = vmatpush1.bf16.msra.mxu0 0
  %277 = vmatprep.subr.bf16.mxu0 0
  %278 = vmatpush1.bf16.msra.mxu0 0
  %279 = vmatprep.subr.bf16.mxu0 0
  %280 = vmatpush1.bf16.msra.mxu0 0
  %281 = vmatprep.subr.bf16.mxu0 0
  %282 = vmatpush1.bf16.msra.mxu0 0
  %283 = vmatprep.subr.bf16.mxu0 0
  %284 = vmatpush1.bf16.msra.mxu0 0
  %285 = vmatprep.subr.bf16.mxu0 0
  %286 = vmatpush1.bf16.msra.mxu0 0
  %287 = vmatprep.subr.bf16.mxu0 0
  %288 = vmatpush1.bf16.msra.mxu0 0
  %289 = vmatprep.subr.bf16.mxu0 0
  %290 = vmatpush1.bf16.msra.mxu0 0
  %291 = vmatprep.subr.bf16.mxu0 0
  %292 = vmatpush1.bf16.msra.mxu0 0
  %293 = vmatprep.subr.bf16.mxu0 0
  %294 = vmatpush1.bf16.msra.mxu0 0
  %295 = vmatprep.subr.bf16.mxu0 0
  %296 = vmatpush1.bf16.msra.mxu0 0
  %297 = vmatprep.subr.bf16.mxu0 0
  %298 = vmatpush1.bf16.msra.mxu0 0
  %299 = vmatprep.subr.bf16.mxu0 0
  %300 = vmatpush1.bf16.msra.mxu0 0
  %301 = vmatprep.subr.bf16.mxu0 0
  %302 = vmatpush1.bf16.msra.mxu0 0
  %303 = vmatprep.mubr.bf16.mxu0 0
  %304 = vmatmul.mubr.bf16.gmra.mrb[0].mxu0 %v269
  %v305 = vpop.f32.mrb[0].mxu0
  %v306 = vadd.f32 0.0, %v305
  %v307 = vpop.f32.mrb[0].mxu0
  %v308 = vpop.f32.mrb[0].mxu0
  %v309 = vpop.f32.mrb[0].mxu0
  %310 = vdwg.mxu0
  %v311 = vadd.f32 %v263, %v306
  %v312 = vxor.u32 %v311, 2147483648
  %v313 = vmul.f32 %v312, 1.442695
  %v314 = vpow.pop %v313
  %v315 = vadd.f32 %v314, 1.0
  %v316 = vrcp.pop %v315
  %v317 = vmul.f32 1.0, %v316
  %v318 = vtanh.pop %v311
  %v319 = vmul.f32 %v317, %v255
  %321 = vrot.lane.b32.xlu0 %v318, 64
  %v322 = vpop.permute.xlu0 %321
  %v324 = vmul.f32 %v317, %v322
  %326 = vrot.lane.b32.xlu0 %v324, 32
  %v327 = vpop.permute.xlu0 %326
  %v329 = vadd.f32 %v319, %v327
  %v330 = vtanh.pop %v329
  %332 = vrot.lane.b32.xlu0 %v330, 64
  %v333 = vpop.permute.xlu0 %332
  %v335 = vmul.f32 %v317, %v333
  %s336 = scalar_lea.vmem %s0, 32
  %v337 = vld [vmem:[%s336] sm:$0xff]
  %v338 = vpack.c.bf16 %v335, %v335
  %340 = vrot.lane.b32.xlu0 %v338, 32
  %v341 = vpop.permute.xlu0 %340
  %v343 = vsel %vm41, %v341, 0
  %345 = vmatprep.subr.bf16.mxu0 0
  %346 = vmatpush1.bf16.msra.mxu0 %v37
  %347 = vmatprep.subr.bf16.mxu0 0
  %348 = vmatpush1.bf16.msra.mxu0 %v38
  %349 = vmatprep.subr.bf16.mxu0 0
  %350 = vmatpush1.bf16.msra.mxu0 0
  %351 = vmatprep.subr.bf16.mxu0 0
  %352 = vmatpush1.bf16.msra.mxu0 0
  %353 = vmatprep.subr.bf16.mxu0 0
  %354 = vmatpush1.bf16.msra.mxu0 0
  %355 = vmatprep.subr.bf16.mxu0 0
  %356 = vmatpush1.bf16.msra.mxu0 0
  %357 = vmatprep.subr.bf16.mxu0 0
  %358 = vmatpush1.bf16.msra.mxu0 0
  %359 = vmatprep.subr.bf16.mxu0 0
  %360 = vmatpush1.bf16.msra.mxu0 0
  %361 = vmatprep.subr.bf16.mxu0 0
  %362 = vmatpush1.bf16.msra.mxu0 0
  %363 = vmatprep.subr.bf16.mxu0 0
  %364 = vmatpush1.bf16.msra.mxu0 0
  %365 = vmatprep.subr.bf16.mxu0 0
  %366 = vmatpush1.bf16.msra.mxu0 0
  %367 = vmatprep.subr.bf16.mxu0 0
  %368 = vmatpush1.bf16.msra.mxu0 0
  %369 = vmatprep.subr.bf16.mxu0 0
  %370 = vmatpush1.bf16.msra.mxu0 0
  %371 = vmatprep.subr.bf16.mxu0 0
  %372 = vmatpush1.bf16.msra.mxu0 0
  %373 = vmatprep.subr.bf16.mxu0 0
  %374 = vmatpush1.bf16.msra.mxu0 0
  %375 = vmatprep.subr.bf16.mxu0 0
  %376 = vmatpush1.bf16.msra.mxu0 0
  %377 = vmatprep.mubr.bf16.mxu0 0
  %378 = vmatmul.mubr.bf16.gmra.mrb[0].mxu0 %v343
  %v379 = vpop.f32.mrb[0].mxu0
  %v380 = vadd.f32 0.0, %v379
  %v381 = vpop.f32.mrb[0].mxu0
  %v382 = vpop.f32.mrb[0].mxu0
  %v383 = vpop.f32.mrb[0].mxu0
  %384 = vdwg.mxu0
  %v385 = vadd.f32 %v337, %v380
  %v386 = vxor.u32 %v385, 2147483648
  %v387 = vmul.f32 %v386, 1.442695
  %v388 = vpow.pop %v387
  %v389 = vadd.f32 %v388, 1.0
  %v390 = vrcp.pop %v389
  %v391 = vmul.f32 1.0, %v390
  %v392 = vtanh.pop %v385
  %v393 = vmul.f32 %v391, %v329
  %395 = vrot.lane.b32.xlu0 %v392, 64
  %v396 = vpop.permute.xlu0 %395
  %v398 = vmul.f32 %v391, %v396
  %400 = vrot.lane.b32.xlu0 %v398, 32
  %v401 = vpop.permute.xlu0 %400
  %v403 = vadd.f32 %v393, %v401
  %v404 = vtanh.pop %v403
  %406 = vrot.lane.b32.xlu0 %v404, 64
  %v407 = vpop.permute.xlu0 %406
  %v409 = vmul.f32 %v391, %v407
  %s410 = scalar_lea.vmem %s0, 40
  %v411 = vld [vmem:[%s410] sm:$0xff]
  %v412 = vpack.c.bf16 %v409, %v409
  %414 = vrot.lane.b32.xlu0 %v412, 32
  %v415 = vpop.permute.xlu0 %414
  %v417 = vsel %vm41, %v415, 0
  %419 = vmatprep.subr.bf16.mxu0 0
  %420 = vmatpush1.bf16.msra.mxu0 %v37
  %421 = vmatprep.subr.bf16.mxu0 0
  %422 = vmatpush1.bf16.msra.mxu0 %v38
  %423 = vmatprep.subr.bf16.mxu0 0
  %424 = vmatpush1.bf16.msra.mxu0 0
  %425 = vmatprep.subr.bf16.mxu0 0
  %426 = vmatpush1.bf16.msra.mxu0 0
  %427 = vmatprep.subr.bf16.mxu0 0
  %428 = vmatpush1.bf16.msra.mxu0 0
  %429 = vmatprep.subr.bf16.mxu0 0
  %430 = vmatpush1.bf16.msra.mxu0 0
  %431 = vmatprep.subr.bf16.mxu0 0
  %432 = vmatpush1.bf16.msra.mxu0 0
  %433 = vmatprep.subr.bf16.mxu0 0
  %434 = vmatpush1.bf16.msra.mxu0 0
  %435 = vmatprep.subr.bf16.mxu0 0
  %436 = vmatpush1.bf16.msra.mxu0 0
  %437 = vmatprep.subr.bf16.mxu0 0
  %438 = vmatpush1.bf16.msra.mxu0 0
  %439 = vmatprep.subr.bf16.mxu0 0
  %440 = vmatpush1.bf16.msra.mxu0 0
  %441 = vmatprep.subr.bf16.mxu0 0
  %442 = vmatpush1.bf16.msra.mxu0 0
  %443 = vmatprep.subr.bf16.mxu0 0
  %444 = vmatpush1.bf16.msra.mxu0 0
  %445 = vmatprep.subr.bf16.mxu0 0
  %446 = vmatpush1.bf16.msra.mxu0 0
  %447 = vmatprep.subr.bf16.mxu0 0
  %448 = vmatpush1.bf16.msra.mxu0 0
  %449 = vmatprep.subr.bf16.mxu0 0
  %450 = vmatpush1.bf16.msra.mxu0 0
  %451 = vmatprep.mubr.bf16.mxu0 0
  %452 = vmatmul.mubr.bf16.gmra.mrb[0].mxu0 %v417
  %v453 = vpop.f32.mrb[0].mxu0
  %v454 = vadd.f32 0.0, %v453
  %v455 = vpop.f32.mrb[0].mxu0
  %v456 = vpop.f32.mrb[0].mxu0
  %v457 = vpop.f32.mrb[0].mxu0
  %458 = vdwg.mxu0
  %v459 = vadd.f32 %v411, %v454
  %v460 = vxor.u32 %v459, 2147483648
  %v461 = vmul.f32 %v460, 1.442695
  %v462 = vpow.pop %v461
  %v463 = vadd.f32 %v462, 1.0
  %v464 = vrcp.pop %v463
  %v465 = vmul.f32 1.0, %v464
  %v466 = vtanh.pop %v459
  %v467 = vmul.f32 %v465, %v403
  %469 = vrot.lane.b32.xlu0 %v466, 64
  %v470 = vpop.permute.xlu0 %469
  %v472 = vmul.f32 %v465, %v470
  %474 = vrot.lane.b32.xlu0 %v472, 32
  %v475 = vpop.permute.xlu0 %474
  %v477 = vadd.f32 %v467, %v475
  %v478 = vtanh.pop %v477
  %480 = vrot.lane.b32.xlu0 %v478, 64
  %v481 = vpop.permute.xlu0 %480
  %v483 = vmul.f32 %v465, %v481
  %s484 = scalar_lea.vmem %s0, 48
  %v485 = vld [vmem:[%s484] sm:$0xff]
  %v486 = vpack.c.bf16 %v483, %v483
  %488 = vrot.lane.b32.xlu0 %v486, 32
  %v489 = vpop.permute.xlu0 %488
  %v491 = vsel %vm41, %v489, 0
  %493 = vmatprep.subr.bf16.mxu0 0
  %494 = vmatpush1.bf16.msra.mxu0 %v37
  %495 = vmatprep.subr.bf16.mxu0 0
  %496 = vmatpush1.bf16.msra.mxu0 %v38
  %497 = vmatprep.subr.bf16.mxu0 0
  %498 = vmatpush1.bf16.msra.mxu0 0
  %499 = vmatprep.subr.bf16.mxu0 0
  %500 = vmatpush1.bf16.msra.mxu0 0
  %501 = vmatprep.subr.bf16.mxu0 0
  %502 = vmatpush1.bf16.msra.mxu0 0
  %503 = vmatprep.subr.bf16.mxu0 0
  %504 = vmatpush1.bf16.msra.mxu0 0
  %505 = vmatprep.subr.bf16.mxu0 0
  %506 = vmatpush1.bf16.msra.mxu0 0
  %507 = vmatprep.subr.bf16.mxu0 0
  %508 = vmatpush1.bf16.msra.mxu0 0
  %509 = vmatprep.subr.bf16.mxu0 0
  %510 = vmatpush1.bf16.msra.mxu0 0
  %511 = vmatprep.subr.bf16.mxu0 0
  %512 = vmatpush1.bf16.msra.mxu0 0
  %513 = vmatprep.subr.bf16.mxu0 0
  %514 = vmatpush1.bf16.msra.mxu0 0
  %515 = vmatprep.subr.bf16.mxu0 0
  %516 = vmatpush1.bf16.msra.mxu0 0
  %517 = vmatprep.subr.bf16.mxu0 0
  %518 = vmatpush1.bf16.msra.mxu0 0
  %519 = vmatprep.subr.bf16.mxu0 0
  %520 = vmatpush1.bf16.msra.mxu0 0
  %521 = vmatprep.subr.bf16.mxu0 0
  %522 = vmatpush1.bf16.msra.mxu0 0
  %523 = vmatprep.subr.bf16.mxu0 0
  %524 = vmatpush1.bf16.msra.mxu0 0
  %525 = vmatprep.mubr.bf16.mxu0 0
  %526 = vmatmul.mubr.bf16.gmra.mrb[0].mxu0 %v491
  %v527 = vpop.f32.mrb[0].mxu0
  %v528 = vadd.f32 0.0, %v527
  %v529 = vpop.f32.mrb[0].mxu0
  %v530 = vpop.f32.mrb[0].mxu0
  %v531 = vpop.f32.mrb[0].mxu0
  %532 = vdwg.mxu0
  %v533 = vadd.f32 %v485, %v528
  %v534 = vxor.u32 %v533, 2147483648
  %v535 = vmul.f32 %v534, 1.442695
  %v536 = vpow.pop %v535
  %v537 = vadd.f32 %v536, 1.0
  %v538 = vrcp.pop %v537
  %v539 = vmul.f32 1.0, %v538
  %v540 = vtanh.pop %v533
  %v541 = vmul.f32 %v539, %v477
  %543 = vrot.lane.b32.xlu0 %v540, 64
  %v544 = vpop.permute.xlu0 %543
  %v546 = vmul.f32 %v539, %v544
  %548 = vrot.lane.b32.xlu0 %v546, 32
  %v549 = vpop.permute.xlu0 %548
  %v551 = vadd.f32 %v541, %v549
  %v552 = vtanh.pop %v551
  %554 = vrot.lane.b32.xlu0 %v552, 64
  %v555 = vpop.permute.xlu0 %554
  %v557 = vmul.f32 %v539, %v555
  %s558 = scalar_lea.vmem %s0, 56
  %v559 = vld [vmem:[%s558] sm:$0xff]
  %v560 = vpack.c.bf16 %v557, %v557
  %562 = vrot.lane.b32.xlu0 %v560, 32
  %v563 = vpop.permute.xlu0 %562
  %v565 = vsel %vm41, %v563, 0
  %567 = vmatprep.subr.bf16.mxu0 0
  %568 = vmatpush1.bf16.msra.mxu0 %v37
  %569 = vmatprep.subr.bf16.mxu0 0
  %570 = vmatpush1.bf16.msra.mxu0 %v38
  %571 = vmatprep.subr.bf16.mxu0 0
  %572 = vmatpush1.bf16.msra.mxu0 0
  %573 = vmatprep.subr.bf16.mxu0 0
  %574 = vmatpush1.bf16.msra.mxu0 0
  %575 = vmatprep.subr.bf16.mxu0 0
  %576 = vmatpush1.bf16.msra.mxu0 0
  %577 = vmatprep.subr.bf16.mxu0 0
  %578 = vmatpush1.bf16.msra.mxu0 0
  %579 = vmatprep.subr.bf16.mxu0 0
  %580 = vmatpush1.bf16.msra.mxu0 0
  %581 = vmatprep.subr.bf16.mxu0 0
  %582 = vmatpush1.bf16.msra.mxu0 0
  %583 = vmatprep.subr.bf16.mxu0 0
  %584 = vmatpush1.bf16.msra.mxu0 0
  %585 = vmatprep.subr.bf16.mxu0 0
  %586 = vmatpush1.bf16.msra.mxu0 0
  %587 = vmatprep.subr.bf16.mxu0 0
  %588 = vmatpush1.bf16.msra.mxu0 0
  %589 = vmatprep.subr.bf16.mxu0 0
  %590 = vmatpush1.bf16.msra.mxu0 0
  %591 = vmatprep.subr.bf16.mxu0 0
  %592 = vmatpush1.bf16.msra.mxu0 0
  %593 = vmatprep.subr.bf16.mxu0 0
  %594 = vmatpush1.bf16.msra.mxu0 0
  %595 = vmatprep.subr.bf16.mxu0 0
  %596 = vmatpush1.bf16.msra.mxu0 0
  %597 = vmatprep.subr.bf16.mxu0 0
  %598 = vmatpush1.bf16.msra.mxu0 0
  %599 = vmatprep.mubr.bf16.mxu0 0
  %600 = vmatmul.mubr.bf16.gmra.mrb[0].mxu0 %v565
  %v601 = vpop.f32.mrb[0].mxu0
  %v602 = vadd.f32 0.0, %v601
  %v603 = vpop.f32.mrb[0].mxu0
  %v604 = vpop.f32.mrb[0].mxu0
  %v605 = vpop.f32.mrb[0].mxu0
  %606 = vdwg.mxu0
  %v607 = vadd.f32 %v559, %v602
  %v608 = vxor.u32 %v607, 2147483648
  %v609 = vmul.f32 %v608, 1.442695
  %v610 = vpow.pop %v609
  %v611 = vadd.f32 %v610, 1.0
  %v612 = vrcp.pop %v611
  %v613 = vmul.f32 1.0, %v612
  %v614 = vtanh.pop %v607
  %v615 = vmul.f32 %v613, %v551
  %617 = vrot.lane.b32.xlu0 %v614, 64
  %v618 = vpop.permute.xlu0 %617
  %v620 = vmul.f32 %v613, %v618
  %622 = vrot.lane.b32.xlu0 %v620, 32
  %v623 = vpop.permute.xlu0 %622
  %v625 = vadd.f32 %v615, %v623
  %v626 = vtanh.pop %v625
  %628 = vrot.lane.b32.xlu0 %v626, 64
  %v629 = vpop.permute.xlu0 %628
  %v631 = vmul.f32 %v613, %v629
  %633 = vrot.lane.b32.xlu0 %v631, 32
  %v634 = vpop.permute.xlu0 %633
  %636 = vst.msk [vmem:[%s2] sm:$0xff] %vm41, %v634
  %638 = vrot.lane.b32.xlu0 %v625, 96
  %v639 = vpop.permute.xlu0 %638
  %641 = vst.msk [vmem:[%s3] sm:$0xff] %vm41, %v639
  // Predicated region
  $region14: #{seq2seq_forward.7} parent=0 // pred_check
    _
  $region15: #{seq2seq_forward.7} parent=0 // pred_check_branch
    %643 = sbr.rel (0) target = $region17
  $region16: #{seq2seq_forward.7} parent=0 // pred_region
    _
  $region17: #{seq2seq_forward.7} parent=0 // pred_fallthru
    _
  // Predicated region
  $region18: #{seq2seq_forward.7} parent=0 // pred_check
    _
  $region19: #{seq2seq_forward.7} parent=0 // pred_check_branch
    %645 = sbr.rel (0) target = $region21
  $region20: #{seq2seq_forward.7} parent=0 // pred_region
    _
  $region21: #{seq2seq_forward.7} parent=0 // pred_fallthru
    _
  // Predicated region
  $region22: #{seq2seq_forward.7} parent=0 // pred_check
    _
  $region23: #{seq2seq_forward.7} parent=0 // pred_check_branch
    %647 = sbr.rel (0) target = $region25
  $region24: #{seq2seq_forward.7} parent=0 // pred_region
    _
  $region25: #{seq2seq_forward.7} parent=0 // pred_fallthru
    _
  // Predicated region
  $region26: #{seq2seq_forward.7} parent=0 // pred_check
    _
  $region27: #{seq2seq_forward.7} parent=0 // pred_check_branch
    %649 = sbr.rel (0) target = $region29
  $region28: #{seq2seq_forward.7} parent=0 // pred_region
    _
  $region29: #{seq2seq_forward.7} parent=0 // pred_fallthru
    _

// kernel: seq2seq_forward.8
$region0: #{seq2seq_forward.8}
  #allocation0 [shape = 'u32[]', space=smem, size = 0x4, offset = 0x4, fixed_abs, tag = 'smem constant byte address 0x4 - core index']
  #allocation1 [shape = 'u32[144,128]{1,0:T(1,128)}', space=vmem, size = 0x12000, scoped, tag = 'internal scratch']
  #allocation2 [shape = 'f32[8,32]{1,0:T(8,128)}', space=vmem, size = 0x1000, scoped, tag = 'scratch operand']
  #allocation3 [shape = 'f32[8,32]{1,0:T(8,128)}', space=vmem, size = 0x1000, scoped, tag = 'scratch operand']
  %s0 = inlined_call_operand.vmem [shape: f32[8,32], index: 0, kind: input, shape index: {}]
  %s1 = inlined_call_operand.vmem [shape: f32[8,32], index: 1, kind: input, shape index: {}]
  %s2 = inlined_call_operand.vmem [shape: f32[7,8,128], index: 2, kind: input, shape index: {}]
  %s3 = inlined_call_operand.vmem [shape: bf16[32,128], index: 3, kind: input, shape index: {}]
  %s4 = inlined_call_operand.vmem [shape: bf16[8,8,32], index: 4, kind: output, shape index: {}]
  %s5 = sld [smem:[#allocation0]]
  $region30: #{seq2seq_forward.8} parent=0
    _
  %s7 = ssub.s32 1, %s5
  %s8 = scalar_select 0, %s7, %s5
  // Predicated region
  $region2: #{seq2seq_forward.8} parent=0 // pred_check
    _
  $region3: #{seq2seq_forward.8} parent=0 // pred_check_branch
    %10 = sbr.rel (0) target = $region5
  $region4: #{seq2seq_forward.8} parent=0 // pred_region
    _
  $region5: #{seq2seq_forward.8} parent=0 // pred_fallthru
    _
  // Predicated region
  $region6: #{seq2seq_forward.8} parent=0 // pred_check
    _
  $region7: #{seq2seq_forward.8} parent=0 // pred_check_branch
    %12 = sbr.rel (0) target = $region9
  $region8: #{seq2seq_forward.8} parent=0 // pred_region
    _
  $region9: #{seq2seq_forward.8} parent=0 // pred_fallthru
    _
  // Predicated region
  $region10: #{seq2seq_forward.8} parent=0 // pred_check
    _
  $region11: #{seq2seq_forward.8} parent=0 // pred_check_branch
    %14 = sbr.rel (0) target = $region13
  $region12: #{seq2seq_forward.8} parent=0 // pred_region
    _
  $region13: #{seq2seq_forward.8} parent=0 // pred_fallthru
    _
  // Predicated region
  $region14: #{seq2seq_forward.8} parent=0 // pred_check
    _
  $region15: #{seq2seq_forward.8} parent=0 // pred_check_branch
    %16 = sbr.rel (0) target = $region17
  $region16: #{seq2seq_forward.8} parent=0 // pred_region
    _
  $region17: #{seq2seq_forward.8} parent=0 // pred_fallthru
    _
  %p18 = scmp.eq.s32.totalorder 0, 0
  // Predicated region
  $region18: #{seq2seq_forward.8} parent=0 // pred_check
    %p19 = pneg %p18
  $region19: #{seq2seq_forward.8} parent=0 // pred_check_branch
    %21 = sbr.rel (%p19) target = $region21
  $region20: #{seq2seq_forward.8} parent=0 // pred_region
    %v22 = vld [vmem:[%s0] sm:$0xff]
    %vm23 = vcmask 261120
    %24 = vst.msk [vmem:[#allocation2] sm:$0xff] %vm23, %v22
    %v25 = vld [vmem:[%s1] sm:$0xff]
    %26 = vst.msk [vmem:[#allocation3] sm:$0xff] %vm23, %v25
    %vm27 = vcmask 257024
    %28 = vst.msk [vmem:[%s4] sm:$0xf] %vm27, 0
  $region21: #{seq2seq_forward.8} parent=0 // pred_fallthru
    _
  %v29 = vld [vmem:[%s3] sm:$0xf]
  %v30 = vld [vmem:[%s3 + $0x4] sm:$0xf]
  %v31 = vld [vmem:[%s3 + $0x8] sm:$0xf]
  %v32 = vld [vmem:[%s3 + $0xc] sm:$0xf]
  %v33 = vld [vmem:[#allocation2] sm:$0xff]
  %v34 = vld [vmem:[#allocation3] sm:$0xff]
  %v35 = vld [vmem:[%s2] sm:$0xff]
  %v36 = vpack.c.bf16 %v33, %v33
  %v41 = vunpack.c.l.b16 %v29
  %v42 = vunpack.c.l.b16 %v30
  %v43 = vunpack.c.l.b16 %v31
  %v44 = vunpack.c.l.b16 %v32
  %v45 = vpack.c.b16 %v42, %v41
  %v46 = vpack.c.b16 %v44, %v43
  %vm49 = vcmask 261120
  %v51 = vsel %vm49, %v36, 0
  %53 = vmatprep.subr.bf16.mxu0 0
  %54 = vmatpush1.bf16.msra.mxu0 %v45
  %55 = vmatprep.subr.bf16.mxu0 0
  %56 = vmatpush1.bf16.msra.mxu0 %v46
  %57 = vmatprep.subr.bf16.mxu0 0
  %58 = vmatpush1.bf16.msra.mxu0 0
  %59 = vmatprep.subr.bf16.mxu0 0
  %60 = vmatpush1.bf16.msra.mxu0 0
  %61 = vmatprep.subr.bf16.mxu0 0
  %62 = vmatpush1.bf16.msra.mxu0 0
  %63 = vmatprep.subr.bf16.mxu0 0
  %64 = vmatpush1.bf16.msra.mxu0 0
  %65 = vmatprep.subr.bf16.mxu0 0
  %66 = vmatpush1.bf16.msra.mxu0 0
  %67 = vmatprep.subr.bf16.mxu0 0
  %68 = vmatpush1.bf16.msra.mxu0 0
  %69 = vmatprep.subr.bf16.mxu0 0
  %70 = vmatpush1.bf16.msra.mxu0 0
  %71 = vmatprep.subr.bf16.mxu0 0
  %72 = vmatpush1.bf16.msra.mxu0 0
  %73 = vmatprep.subr.bf16.mxu0 0
  %74 = vmatpush1.bf16.msra.mxu0 0
  %75 = vmatprep.subr.bf16.mxu0 0
  %76 = vmatpush1.bf16.msra.mxu0 0
  %77 = vmatprep.subr.bf16.mxu0 0
  %78 = vmatpush1.bf16.msra.mxu0 0
  %79 = vmatprep.subr.bf16.mxu0 0
  %80 = vmatpush1.bf16.msra.mxu0 0
  %81 = vmatprep.subr.bf16.mxu0 0
  %82 = vmatpush1.bf16.msra.mxu0 0
  %83 = vmatprep.subr.bf16.mxu0 0
  %84 = vmatpush1.bf16.msra.mxu0 0
  %85 = vmatprep.mubr.bf16.mxu0 0
  %86 = vmatmul.mubr.bf16.gmra.mrb[0].mxu0 %v51
  %v87 = vpop.f32.mrb[0].mxu0
  %v88 = vadd.f32 0.0, %v87
  %v89 = vpop.f32.mrb[0].mxu0
  %v90 = vpop.f32.mrb[0].mxu0
  %v91 = vpop.f32.mrb[0].mxu0
  %92 = vdwg.mxu0
  %v93 = vadd.f32 %v35, %v88
  %v94 = vxor.u32 %v93, 2147483648
  %v95 = vmul.f32 %v94, 1.442695
  %v96 = vpow.pop %v95
  %v97 = vadd.f32 %v96, 1.0
  %v98 = vrcp.pop %v97
  %v99 = vmul.f32 1.0, %v98
  %v100 = vtanh.pop %v93
  %102 = vrot.lane.b32.xlu0 %v34, 32
  %v103 = vpop.permute.xlu0 %102
  %v105 = vmul.f32 %v99, %v103
  %107 = vrot.lane.b32.xlu0 %v100, 64
  %v108 = vpop.permute.xlu0 %107
  %v110 = vmul.f32 %v99, %v108
  %112 = vrot.lane.b32.xlu0 %v110, 32
  %v113 = vpop.permute.xlu0 %112
  %v115 = vadd.f32 %v105, %v113
  %v116 = vtanh.pop %v115
  %118 = vrot.lane.b32.xlu0 %v116, 64
  %v119 = vpop.permute.xlu0 %118
  %v121 = vmul.f32 %v99, %v119
  %v122 = vpack.c.bf16 %v121, %v121
  %s123 = smul.u32 0, 7
  %s124 = sadd.s32 %s123, 1
  %v126 = vunpack.c.l.b16 %v122
  %v127 = vpack.c.b16 %v126, %v126
  %128 = vrot.lane.b32.xlu0 %v127, 32
  %v129 = vpop.permute.xlu0 %128
  %s131 = smul.addr %s124, 4
  %s132 = scalar_lea.vmem %s4, %s131
  %vm133 = vcmask 257024
  %134 = vst.msk [vmem:[%s132] sm:$0xf] %vm133, %v129
  %s135 = scalar_lea.vmem %s2, 8
  %v136 = vld [vmem:[%s135] sm:$0xff]
  %137 = vrot.lane.b32.xlu0 %v122, 32
  %v138 = vpop.permute.xlu0 %137
  %v140 = vsel %vm49, %v138, 0
  %142 = vmatprep.subr.bf16.mxu0 0
  %143 = vmatpush1.bf16.msra.mxu0 %v45
  %144 = vmatprep.subr.bf16.mxu0 0
  %145 = vmatpush1.bf16.msra.mxu0 %v46
  %146 = vmatprep.subr.bf16.mxu0 0
  %147 = vmatpush1.bf16.msra.mxu0 0
  %148 = vmatprep.subr.bf16.mxu0 0
  %149 = vmatpush1.bf16.msra.mxu0 0
  %150 = vmatprep.subr.bf16.mxu0 0
  %151 = vmatpush1.bf16.msra.mxu0 0
  %152 = vmatprep.subr.bf16.mxu0 0
  %153 = vmatpush1.bf16.msra.mxu0 0
  %154 = vmatprep.subr.bf16.mxu0 0
  %155 = vmatpush1.bf16.msra.mxu0 0
  %156 = vmatprep.subr.bf16.mxu0 0
  %157 = vmatpush1.bf16.msra.mxu0 0
  %158 = vmatprep.subr.bf16.mxu0 0
  %159 = vmatpush1.bf16.msra.mxu0 0
  %160 = vmatprep.subr.bf16.mxu0 0
  %161 = vmatpush1.bf16.msra.mxu0 0
  %162 = vmatprep.subr.bf16.mxu0 0
  %163 = vmatpush1.bf16.msra.mxu0 0
  %164 = vmatprep.subr.bf16.mxu0 0
  %165 = vmatpush1.bf16.msra.mxu0 0
  %166 = vmatprep.subr.bf16.mxu0 0
  %167 = vmatpush1.bf16.msra.mxu0 0
  %168 = vmatprep.subr.bf16.mxu0 0
  %169 = vmatpush1.bf16.msra.mxu0 0
  %170 = vmatprep.subr.bf16.mxu0 0
  %171 = vmatpush1.bf16.msra.mxu0 0
  %172 = vmatprep.subr.bf16.mxu0 0
  %173 = vmatpush1.bf16.msra.mxu0 0
  %174 = vmatprep.mubr.bf16.mxu0 0
  %175 = vmatmul.mubr.bf16.gmra.mrb[0].mxu0 %v140
  %v176 = vpop.f32.mrb[0].mxu0
  %v177 = vadd.f32 0.0, %v176
  %v178 = vpop.f32.mrb[0].mxu0
  %v179 = vpop.f32.mrb[0].mxu0
  %v180 = vpop.f32.mrb[0].mxu0
  %181 = vdwg.mxu0
  %v182 = vadd.f32 %v136, %v177
  %v183 = vxor.u32 %v182, 2147483648
  %v184 = vmul.f32 %v183, 1.442695
  %v185 = vpow.pop %v184
  %v186 = vadd.f32 %v185, 1.0
  %v187 = vrcp.pop %v186
  %v188 = vmul.f32 1.0, %v187
  %v189 = vtanh.pop %v182
  %v190 = vmul.f32 %v188, %v115
  %192 = vrot.lane.b32.xlu0 %v189, 64
  %v193 = vpop.permute.xlu0 %192
  %v195 = vmul.f32 %v188, %v193
  %197 = vrot.lane.b32.xlu0 %v195, 32
  %v198 = vpop.permute.xlu0 %197
  %v200 = vadd.f32 %v190, %v198
  %v201 = vtanh.pop %v200
  %203 = vrot.lane.b32.xlu0 %v201, 64
  %v204 = vpop.permute.xlu0 %203
  %v206 = vmul.f32 %v188, %v204
  %v207 = vpack.c.bf16 %v206, %v206
  %s208 = sadd.s32 %s123, 2
  %v210 = vunpack.c.l.b16 %v207
  %v211 = vpack.c.b16 %v210, %v210
  %212 = vrot.lane.b32.xlu0 %v211, 32
  %v213 = vpop.permute.xlu0 %212
  %s215 = smul.addr %s208, 4
  %s216 = scalar_lea.vmem %s4, %s215
  %217 = vst.msk [vmem:[%s216] sm:$0xf] %vm133, %v213
  %s218 = scalar_lea.vmem %s2, 16
  %v219 = vld [vmem:[%s218] sm:$0xff]
  %220 = vrot.lane.b32.xlu0 %v207, 32
  %v221 = vpop.permute.xlu0 %220
  %v223 = vsel %vm49, %v221, 0
  %225 = vmatprep.subr.bf16.mxu0 0
  %226 = vmatpush1.bf16.msra.mxu0 %v45
  %227 = vmatprep.subr.bf16.mxu0 0
  %228 = vmatpush1.bf16.msra.mxu0 %v46
  %229 = vmatprep.subr.bf16.mxu0 0
  %230 = vmatpush1.bf16.msra.mxu0 0
  %231 = vmatprep.subr.bf16.mxu0 0
  %232 = vmatpush1.bf16.msra.mxu0 0
  %233 = vmatprep.subr.bf16.mxu0 0
  %234 = vmatpush1.bf16.msra.mxu0 0
  %235 = vmatprep.subr.bf16.mxu0 0
  %236 = vmatpush1.bf16.msra.mxu0 0
  %237 = vmatprep.subr.bf16.mxu0 0
  %238 = vmatpush1.bf16.msra.mxu0 0
  %239 = vmatprep.subr.bf16.mxu0 0
  %240 = vmatpush1.bf16.msra.mxu0 0
  %241 = vmatprep.subr.bf16.mxu0 0
  %242 = vmatpush1.bf16.msra.mxu0 0
  %243 = vmatprep.subr.bf16.mxu0 0
  %244 = vmatpush1.bf16.msra.mxu0 0
  %245 = vmatprep.subr.bf16.mxu0 0
  %246 = vmatpush1.bf16.msra.mxu0 0
  %247 = vmatprep.subr.bf16.mxu0 0
  %248 = vmatpush1.bf16.msra.mxu0 0
  %249 = vmatprep.subr.bf16.mxu0 0
  %250 = vmatpush1.bf16.msra.mxu0 0
  %251 = vmatprep.subr.bf16.mxu0 0
  %252 = vmatpush1.bf16.msra.mxu0 0
  %253 = vmatprep.subr.bf16.mxu0 0
  %254 = vmatpush1.bf16.msra.mxu0 0
  %255 = vmatprep.subr.bf16.mxu0 0
  %256 = vmatpush1.bf16.msra.mxu0 0
  %257 = vmatprep.mubr.bf16.mxu0 0
  %258 = vmatmul.mubr.bf16.gmra.mrb[0].mxu0 %v223
  %v259 = vpop.f32.mrb[0].mxu0
  %v260 = vadd.f32 0.0, %v259
  %v261 = vpop.f32.mrb[0].mxu0
  %v262 = vpop.f32.mrb[0].mxu0
  %v263 = vpop.f32.mrb[0].mxu0
  %264 = vdwg.mxu0
  %v265 = vadd.f32 %v219, %v260
  %v266 = vxor.u32 %v265, 2147483648
  %v267 = vmul.f32 %v266, 1.442695
  %v268 = vpow.pop %v267
  %v269 = vadd.f32 %v268, 1.0
  %v270 = vrcp.pop %v269
  %v271 = vmul.f32 1.0, %v270
  %v272 = vtanh.pop %v265
  %v273 = vmul.f32 %v271, %v200
  %275 = vrot.lane.b32.xlu0 %v272, 64
  %v276 = vpop.permute.xlu0 %275
  %v278 = vmul.f32 %v271, %v276
  %280 = vrot.lane.b32.xlu0 %v278, 32
  %v281 = vpop.permute.xlu0 %280
  %v283 = vadd.f32 %v273, %v281
  %v284 = vtanh.pop %v283
  %286 = vrot.lane.b32.xlu0 %v284, 64
  %v287 = vpop.permute.xlu0 %286
  %v289 = vmul.f32 %v271, %v287
  %v290 = vpack.c.bf16 %v289, %v289
  %s291 = sadd.s32 %s123, 3
  %v293 = vunpack.c.l.b16 %v290
  %v294 = vpack.c.b16 %v293, %v293
  %295 = vrot.lane.b32.xlu0 %v294, 32
  %v296 = vpop.permute.xlu0 %295
  %s298 = smul.addr %s291, 4
  %s299 = scalar_lea.vmem %s4, %s298
  %300 = vst.msk [vmem:[%s299] sm:$0xf] %vm133, %v296
  %s301 = scalar_lea.vmem %s2, 24
  %v302 = vld [vmem:[%s301] sm:$0xff]
  %303 = vrot.lane.b32.xlu0 %v290, 32
  %v304 = vpop.permute.xlu0 %303
  %v306 = vsel %vm49, %v304, 0
  %308 = vmatprep.subr.bf16.mxu0 0
  %309 = vmatpush1.bf16.msra.mxu0 %v45
  %310 = vmatprep.subr.bf16.mxu0 0
  %311 = vmatpush1.bf16.msra.mxu0 %v46
  %312 = vmatprep.subr.bf16.mxu0 0
  %313 = vmatpush1.bf16.msra.mxu0 0
  %314 = vmatprep.subr.bf16.mxu0 0
  %315 = vmatpush1.bf16.msra.mxu0 0
  %316 = vmatprep.subr.bf16.mxu0 0
  %317 = vmatpush1.bf16.msra.mxu0 0
  %318 = vmatprep.subr.bf16.mxu0 0
  %319 = vmatpush1.bf16.msra.mxu0 0
  %320 = vmatprep.subr.bf16.mxu0 0
  %321 = vmatpush1.bf16.msra.mxu0 0
  %322 = vmatprep.subr.bf16.mxu0 0
  %323 = vmatpush1.bf16.msra.mxu0 0
  %324 = vmatprep.subr.bf16.mxu0 0
  %325 = vmatpush1.bf16.msra.mxu0 0
  %326 = vmatprep.subr.bf16.mxu0 0
  %327 = vmatpush1.bf16.msra.mxu0 0
  %328 = vmatprep.subr.bf16.mxu0 0
  %329 = vmatpush1.bf16.msra.mxu0 0
  %330 = vmatprep.subr.bf16.mxu0 0
  %331 = vmatpush1.bf16.msra.mxu0 0
  %332 = vmatprep.subr.bf16.mxu0 0
  %333 = vmatpush1.bf16.msra.mxu0 0
  %334 = vmatprep.subr.bf16.mxu0 0
  %335 = vmatpush1.bf16.msra.mxu0 0
  %336 = vmatprep.subr.bf16.mxu0 0
  %337 = vmatpush1.bf16.msra.mxu0 0
  %338 = vmatprep.subr.bf16.mxu0 0
  %339 = vmatpush1.bf16.msra.mxu0 0
  %340 = vmatprep.mubr.bf16.mxu0 0
  %341 = vmatmul.mubr.bf16.gmra.mrb[0].mxu0 %v306
  %v342 = vpop.f32.mrb[0].mxu0
  %v343 = vadd.f32 0.0, %v342
  %v344 = vpop.f32.mrb[0].mxu0
  %v345 = vpop.f32.mrb[0].mxu0
  %v346 = vpop.f32.mrb[0].mxu0
  %347 = vdwg.mxu0
  %v348 = vadd.f32 %v302, %v343
  %v349 = vxor.u32 %v348, 2147483648
  %v350 = vmul.f32 %v349, 1.442695
  %v351 = vpow.pop %v350
  %v352 = vadd.f32 %v351, 1.0
  %v353 = vrcp.pop %v352
  %v354 = vmul.f32 1.0, %v353
  %v355 = vtanh.pop %v348
  %v356 = vmul.f32 %v354, %v283
  %358 = vrot.lane.b32.xlu0 %v355, 64
  %v359 = vpop.permute.xlu0 %358
  %v361 = vmul.f32 %v354, %v359
  %363 = vrot.lane.b32.xlu0 %v361, 32
  %v364 = vpop.permute.xlu0 %363
  %v366 = vadd.f32 %v356, %v364
  %v367 = vtanh.pop %v366
  %369 = vrot.lane.b32.xlu0 %v367, 64
  %v370 = vpop.permute.xlu0 %369
  %v372 = vmul.f32 %v354, %v370
  %v373 = vpack.c.bf16 %v372, %v372
  %s374 = sadd.s32 %s123, 4
  %v376 = vunpack.c.l.b16 %v373
  %v377 = vpack.c.b16 %v376, %v376
  %378 = vrot.lane.b32.xlu0 %v377, 32
  %v379 = vpop.permute.xlu0 %378
  %s381 = smul.addr %s374, 4
  %s382 = scalar_lea.vmem %s4, %s381
  %383 = vst.msk [vmem:[%s382] sm:$0xf] %vm133, %v379
  %s384 = scalar_lea.vmem %s2, 32
  %v385 = vld [vmem:[%s384] sm:$0xff]
  %386 = vrot.lane.b32.xlu0 %v373, 32
  %v387 = vpop.permute.xlu0 %386
  %v389 = vsel %vm49, %v387, 0
  %391 = vmatprep.subr.bf16.mxu0 0
  %392 = vmatpush1.bf16.msra.mxu0 %v45
  %393 = vmatprep.subr.bf16.mxu0 0
  %394 = vmatpush1.bf16.msra.mxu0 %v46
  %395 = vmatprep.subr.bf16.mxu0 0
  %396 = vmatpush1.bf16.msra.mxu0 0
  %397 = vmatprep.subr.bf16.mxu0 0
  %398 = vmatpush1.bf16.msra.mxu0 0
  %399 = vmatprep.subr.bf16.mxu0 0
  %400 = vmatpush1.bf16.msra.mxu0 0
  %401 = vmatprep.subr.bf16.mxu0 0
  %402 = vmatpush1.bf16.msra.mxu0 0
  %403 = vmatprep.subr.bf16.mxu0 0
  %404 = vmatpush1.bf16.msra.mxu0 0
  %405 = vmatprep.subr.bf16.mxu0 0
  %406 = vmatpush1.bf16.msra.mxu0 0
  %407 = vmatprep.subr.bf16.mxu0 0
  %408 = vmatpush1.bf16.msra.mxu0 0
  %409 = vmatprep.subr.bf16.mxu0 0
  %410 = vmatpush1.bf16.msra.mxu0 0
  %411 = vmatprep.subr.bf16.mxu0 0
  %412 = vmatpush1.bf16.msra.mxu0 0
  %413 = vmatprep.subr.bf16.mxu0 0
  %414 = vmatpush1.bf16.msra.mxu0 0
  %415 = vmatprep.subr.bf16.mxu0 0
  %416 = vmatpush1.bf16.msra.mxu0 0
  %417 = vmatprep.subr.bf16.mxu0 0
  %418 = vmatpush1.bf16.msra.mxu0 0
  %419 = vmatprep.subr.bf16.mxu0 0
  %420 = vmatpush1.bf16.msra.mxu0 0
  %421 = vmatprep.subr.bf16.mxu0 0
  %422 = vmatpush1.bf16.msra.mxu0 0
  %423 = vmatprep.mubr.bf16.mxu0 0
  %424 = vmatmul.mubr.bf16.gmra.mrb[0].mxu0 %v389
  %v425 = vpop.f32.mrb[0].mxu0
  %v426 = vadd.f32 0.0, %v425
  %v427 = vpop.f32.mrb[0].mxu0
  %v428 = vpop.f32.mrb[0].mxu0
  %v429 = vpop.f32.mrb[0].mxu0
  %430 = vdwg.mxu0
  %v431 = vadd.f32 %v385, %v426
  %v432 = vxor.u32 %v431, 2147483648
  %v433 = vmul.f32 %v432, 1.442695
  %v434 = vpow.pop %v433
  %v435 = vadd.f32 %v434, 1.0
  %v436 = vrcp.pop %v435
  %v437 = vmul.f32 1.0, %v436
  %v438 = vtanh.pop %v431
  %v439 = vmul.f32 %v437, %v366
  %441 = vrot.lane.b32.xlu0 %v438, 64
  %v442 = vpop.permute.xlu0 %441
  %v444 = vmul.f32 %v437, %v442
  %446 = vrot.lane.b32.xlu0 %v444, 32
  %v447 = vpop.permute.xlu0 %446
  %v449 = vadd.f32 %v439, %v447
  %v450 = vtanh.pop %v449
  %452 = vrot.lane.b32.xlu0 %v450, 64
  %v453 = vpop.permute.xlu0 %452
  %v455 = vmul.f32 %v437, %v453
  %v456 = vpack.c.bf16 %v455, %v455
  %s457 = sadd.s32 %s123, 5
  %v459 = vunpack.c.l.b16 %v456
  %v460 = vpack.c.b16 %v459, %v459
  %461 = vrot.lane.b32.xlu0 %v460, 32
  %v462 = vpop.permute.xlu0 %461
  %s464 = smul.addr %s457, 4
  %s465 = scalar_lea.vmem %s4, %s464
  %466 = vst.msk [vmem:[%s465] sm:$0xf] %vm133, %v462
  %s467 = scalar_lea.vmem %s2, 40
  %v468 = vld [vmem:[%s467] sm:$0xff]
  %469 = vrot.lane.b32.xlu0 %v456, 32
  %v470 = vpop.permute.xlu0 %469
  %v472 = vsel %vm49, %v470, 0
  %474 = vmatprep.subr.bf16.mxu0 0
  %475 = vmatpush1.bf16.msra.mxu0 %v45
  %476 = vmatprep.subr.bf16.mxu0 0
  %477 = vmatpush1.bf16.msra.mxu0 %v46
  %478 = vmatprep.subr.bf16.mxu0 0
  %479 = vmatpush1.bf16.msra.mxu0 0
  %480 = vmatprep.subr.bf16.mxu0 0
  %481 = vmatpush1.bf16.msra.mxu0 0
  %482 = vmatprep.subr.bf16.mxu0 0
  %483 = vmatpush1.bf16.msra.mxu0 0
  %484 = vmatprep.subr.bf16.mxu0 0
  %485 = vmatpush1.bf16.msra.mxu0 0
  %486 = vmatprep.subr.bf16.mxu0 0
  %487 = vmatpush1.bf16.msra.mxu0 0
  %488 = vmatprep.subr.bf16.mxu0 0
  %489 = vmatpush1.bf16.msra.mxu0 0
  %490 = vmatprep.subr.bf16.mxu0 0
  %491 = vmatpush1.bf16.msra.mxu0 0
  %492 = vmatprep.subr.bf16.mxu0 0
  %493 = vmatpush1.bf16.msra.mxu0 0
  %494 = vmatprep.subr.bf16.mxu0 0
  %495 = vmatpush1.bf16.msra.mxu0 0
  %496 = vmatprep.subr.bf16.mxu0 0
  %497 = vmatpush1.bf16.msra.mxu0 0
  %498 = vmatprep.subr.bf16.mxu0 0
  %499 = vmatpush1.bf16.msra.mxu0 0
  %500 = vmatprep.subr.bf16.mxu0 0
  %501 = vmatpush1.bf16.msra.mxu0 0
  %502 = vmatprep.subr.bf16.mxu0 0
  %503 = vmatpush1.bf16.msra.mxu0 0
  %504 = vmatprep.subr.bf16.mxu0 0
  %505 = vmatpush1.bf16.msra.mxu0 0
  %506 = vmatprep.mubr.bf16.mxu0 0
  %507 = vmatmul.mubr.bf16.gmra.mrb[0].mxu0 %v472
  %v508 = vpop.f32.mrb[0].mxu0
  %v509 = vadd.f32 0.0, %v508
  %v510 = vpop.f32.mrb[0].mxu0
  %v511 = vpop.f32.mrb[0].mxu0
  %v512 = vpop.f32.mrb[0].mxu0
  %513 = vdwg.mxu0
  %v514 = vadd.f32 %v468, %v509
  %v515 = vxor.u32 %v514, 2147483648
  %v516 = vmul.f32 %v515, 1.442695
  %v517 = vpow.pop %v516
  %v518 = vadd.f32 %v517, 1.0
  %v519 = vrcp.pop %v518
  %v520 = vmul.f32 1.0, %v519
  %v521 = vtanh.pop %v514
  %v522 = vmul.f32 %v520, %v449
  %524 = vrot.lane.b32.xlu0 %v521, 64
  %v525 = vpop.permute.xlu0 %524
  %v527 = vmul.f32 %v520, %v525
  %529 = vrot.lane.b32.xlu0 %v527, 32
  %v530 = vpop.permute.xlu0 %529
  %v532 = vadd.f32 %v522, %v530
  %v533 = vtanh.pop %v532
  %535 = vrot.lane.b32.xlu0 %v533, 64
  %v536 = vpop.permute.xlu0 %535
  %v538 = vmul.f32 %v520, %v536
  %v539 = vpack.c.bf16 %v538, %v538
  %s540 = sadd.s32 %s123, 6
  %v542 = vunpack.c.l.b16 %v539
  %v543 = vpack.c.b16 %v542, %v542
  %544 = vrot.lane.b32.xlu0 %v543, 32
  %v545 = vpop.permute.xlu0 %544
  %s547 = smul.addr %s540, 4
  %s548 = scalar_lea.vmem %s4, %s547
  %549 = vst.msk [vmem:[%s548] sm:$0xf] %vm133, %v545
  %s550 = scalar_lea.vmem %s2, 48
  %v551 = vld [vmem:[%s550] sm:$0xff]
  %552 = vrot.lane.b32.xlu0 %v539, 32
  %v553 = vpop.permute.xlu0 %552
  %v555 = vsel %vm49, %v553, 0
  %557 = vmatprep.subr.bf16.mxu0 0
  %558 = vmatpush1.bf16.msra.mxu0 %v45
  %559 = vmatprep.subr.bf16.mxu0 0
  %560 = vmatpush1.bf16.msra.mxu0 %v46
  %561 = vmatprep.subr.bf16.mxu0 0
  %562 = vmatpush1.bf16.msra.mxu0 0
  %563 = vmatprep.subr.bf16.mxu0 0
  %564 = vmatpush1.bf16.msra.mxu0 0
  %565 = vmatprep.subr.bf16.mxu0 0
  %566 = vmatpush1.bf16.msra.mxu0 0
  %567 = vmatprep.subr.bf16.mxu0 0
  %568 = vmatpush1.bf16.msra.mxu0 0
  %569 = vmatprep.subr.bf16.mxu0 0
  %570 = vmatpush1.bf16.msra.mxu0 0
  %571 = vmatprep.subr.bf16.mxu0 0
  %572 = vmatpush1.bf16.msra.mxu0 0
  %573 = vmatprep.subr.bf16.mxu0 0
  %574 = vmatpush1.bf16.msra.mxu0 0
  %575 = vmatprep.subr.bf16.mxu0 0
  %576 = vmatpush1.bf16.msra.mxu0 0
  %577 = vmatprep.subr.bf16.mxu0 0
  %578 = vmatpush1.bf16.msra.mxu0 0
  %579 = vmatprep.subr.bf16.mxu0 0
  %580 = vmatpush1.bf16.msra.mxu0 0
  %581 = vmatprep.subr.bf16.mxu0 0
  %582 = vmatpush1.bf16.msra.mxu0 0
  %583 = vmatprep.subr.bf16.mxu0 0
  %584 = vmatpush1.bf16.msra.mxu0 0
  %585 = vmatprep.subr.bf16.mxu0 0
  %586 = vmatpush1.bf16.msra.mxu0 0
  %587 = vmatprep.subr.bf16.mxu0 0
  %588 = vmatpush1.bf16.msra.mxu0 0
  %589 = vmatprep.mubr.bf16.mxu0 0
  %590 = vmatmul.mubr.bf16.gmra.mrb[0].mxu0 %v555
  %v591 = vpop.f32.mrb[0].mxu0
  %v592 = vadd.f32 0.0, %v591
  %v593 = vpop.f32.mrb[0].mxu0
  %v594 = vpop.f32.mrb[0].mxu0
  %v595 = vpop.f32.mrb[0].mxu0
  %596 = vdwg.mxu0
  %v597 = vadd.f32 %v551, %v592
  %v598 = vxor.u32 %v597, 2147483648
  %v599 = vmul.f32 %v598, 1.442695
  %v600 = vpow.pop %v599
  %v601 = vadd.f32 %v600, 1.0
  %v602 = vrcp.pop %v601
  %v603 = vmul.f32 1.0, %v602
  %v604 = vtanh.pop %v597
  %v605 = vmul.f32 %v603, %v532
  %607 = vrot.lane.b32.xlu0 %v604, 64
  %v608 = vpop.permute.xlu0 %607
  %v610 = vmul.f32 %v603, %v608
  %612 = vrot.lane.b32.xlu0 %v610, 32
  %v613 = vpop.permute.xlu0 %612
  %v615 = vadd.f32 %v605, %v613
  %v616 = vtanh.pop %v615
  %618 = vrot.lane.b32.xlu0 %v616, 64
  %v619 = vpop.permute.xlu0 %618
  %v621 = vmul.f32 %v603, %v619
  %v622 = vpack.c.bf16 %v621, %v621
  %s623 = sadd.s32 %s123, 7
  %v625 = vunpack.c.l.b16 %v622
  %v626 = vpack.c.b16 %v625, %v625
  %627 = vrot.lane.b32.xlu0 %v626, 32
  %v628 = vpop.permute.xlu0 %627
  %s630 = smul.addr %s623, 4
  %s631 = scalar_lea.vmem %s4, %s630
  %632 = vst.msk [vmem:[%s631] sm:$0xf] %vm133, %v628
  %634 = vrot.lane.b32.xlu0 %v621, 32
  %v635 = vpop.permute.xlu0 %634
  %637 = vst.msk [vmem:[#allocation2] sm:$0xff] %vm49, %v635
  %639 = vrot.lane.b32.xlu0 %v615, 96
  %v640 = vpop.permute.xlu0 %639
  %642 = vst.msk [vmem:[#allocation3] sm:$0xff] %vm49, %v640
  // Predicated region
  $region22: #{seq2seq_forward.8} parent=0 // pred_check
    _
  $region23: #{seq2seq_forward.8} parent=0 // pred_check_branch
    %644 = sbr.rel (0) target = $region25
  $region24: #{seq2seq_forward.8} parent=0 // pred_region
    _
  $region25: #{seq2seq_forward.8} parent=0 // pred_fallthru
    _
  // Predicated region
  $region26: #{seq2seq_forward.8} parent=0 // pred_check
    _
  $region27: #{seq2seq_forward.8} parent=0 // pred_check_branch
    %646 = sbr.rel (0) target = $region29
  $region28: #{seq2seq_forward.8} parent=0 // pred_region
    _
  $region29: #{seq2seq_forward.8} parent=0 // pred_fallthru
    _

// kernel: seq2seq_forward.9
$region0: #{seq2seq_forward.9}
  #allocation0 [shape = 'u32[]', space=smem, size = 0x4, offset = 0x4, fixed_abs, tag = 'smem constant byte address 0x4 - core index']
  #allocation1 [shape = 'u32[144,128]{1,0:T(1,128)}', space=vmem, size = 0x12000, scoped, tag = 'internal scratch']
  %s0 = inlined_call_operand.vmem [shape: bf16[64,32], index: 0, kind: input, shape index: {}]
  %s1 = inlined_call_operand.vmem [shape: bf16[32,16], index: 1, kind: input, shape index: {}]
  %s2 = inlined_call_operand.vmem [shape: f32[1,16], index: 2, kind: input, shape index: {}]
  %s3 = inlined_call_operand.hbm [shape: f32[64,16], index: 3, kind: output, shape index: {}]
  %s4 = sld [smem:[#allocation0]]
  $region22: #{seq2seq_forward.9} parent=0
    _
  %s6 = ssub.s32 1, %s4
  %s7 = scalar_select 0, %s6, %s4
  $region1: #{seq2seq_forward.9} parent=0
    #allocation2 [shape = 'u8[32768]{0}', space=vmem, size = 0x8000, scoped, tag = 'output window, operand 0, single buffered']
    #allocation3 [shape = 's32[1]{0}', space=sflag, size = 0x4, scoped, tag = 'scoped memory for seq2seq_forward.9']
    %8 = vsyncpa [#allocation3], 0
    // Predicated region
    $region2: #{seq2seq_forward.9} parent=1 // pred_check
      _
    $region3: #{seq2seq_forward.9} parent=1 // pred_check_branch
      %10 = sbr.rel (0) target = $region5
    $region4: #{seq2seq_forward.9} parent=1 // pred_region
      _
    $region5: #{seq2seq_forward.9} parent=1 // pred_fallthru
      _
    // Predicated region
    $region6: #{seq2seq_forward.9} parent=1 // pred_check
      _
    $region7: #{seq2seq_forward.9} parent=1 // pred_check_branch
      %12 = sbr.rel (0) target = $region9
    $region8: #{seq2seq_forward.9} parent=1 // pred_region
      _
    $region9: #{seq2seq_forward.9} parent=1 // pred_fallthru
      _
    // Predicated region
    $region10: #{seq2seq_forward.9} parent=1 // pred_check
      _
    $region11: #{seq2seq_forward.9} parent=1 // pred_check_branch
      %14 = sbr.rel (0) target = $region13
    $region12: #{seq2seq_forward.9} parent=1 // pred_region
      _
    $region13: #{seq2seq_forward.9} parent=1 // pred_fallthru
      _
    %v16 = vld [vmem:[%s0] sm:$0xf]
    %v17 = vld [vmem:[%s0 + $0x4] sm:$0xf]
    %v18 = vld [vmem:[%s0 + $0x8] sm:$0xf]
    %v19 = vld [vmem:[%s0 + $0xc] sm:$0xf]
    %v20 = vld [vmem:[%s0 + $0x10] sm:$0xf]
    %v21 = vld [vmem:[%s0 + $0x14] sm:$0xf]
    %v22 = vld [vmem:[%s0 + $0x18] sm:$0xf]
    %v23 = vld [vmem:[%s0 + $0x1c] sm:$0xf]
    %v24 = vld [vmem:[%s1] sm:$0xf]
    %v25 = vld [vmem:[%s1 + $0x4] sm:$0xf]
    %v26 = vld [vmem:[%s1 + $0x8] sm:$0xf]
    %v27 = vld [vmem:[%s1 + $0xc] sm:$0xf]
    %v28 = vld [vmem:[%s2] sm:$0x1]
    %v30 = vlaneseq
    %v31 = vshrl.u32 %v30, 7
    %v32 = vsub.s32 0, %v31
    %v33 = vrot.slane %v28, %v32
    %v43 = vunpack.c.l.b16 %v16
    %v44 = vunpack.c.l.b16 %v17
    %v45 = vunpack.c.l.b16 %v18
    %v46 = vunpack.c.l.b16 %v19
    %v47 = vunpack.c.l.b16 %v20
    %v48 = vunpack.c.l.b16 %v21
    %v49 = vunpack.c.l.b16 %v22
    %v50 = vunpack.c.l.b16 %v23
    %v51 = vpack.c.b16 %v44, %v43
    %v52 = vpack.c.b16 %v46, %v45
    %v53 = vpack.c.b16 %v48, %v47
    %v54 = vpack.c.b16 %v50, %v49
    %v59 = vunpack.c.l.b16 %v24
    %v60 = vunpack.c.l.b16 %v25
    %v61 = vunpack.c.l.b16 %v26
    %v62 = vunpack.c.l.b16 %v27
    %v63 = vpack.c.b16 %v60, %v59
    %v64 = vpack.c.b16 %v62, %v61
    %vm67 = vcmask 261120
    %v69 = vsel %vm67, %v51, 0
    %v72 = vsel %vm67, %v52, 0
    %v75 = vsel %vm67, %v53, 0
    %v78 = vsel %vm67, %v54, 0
    %80 = vmatprep.subr.bf16.mxu0 0
    %81 = vmatpush1.bf16.msra.mxu0 %v63
    %82 = vmatprep.subr.bf16.mxu0 0
    %83 = vmatpush1.bf16.msra.mxu0 %v64
    %84 = vmatprep.subr.bf16.mxu0 0
    %85 = vmatpush1.bf16.msra.mxu0 0
    %86 = vmatprep.subr.bf16.mxu0 0
    %87 = vmatpush1.bf16.msra.mxu0 0
    %88 = vmatprep.subr.bf16.mxu0 0
    %89 = vmatpush1.bf16.msra.mxu0 0
    %90 = vmatprep.subr.bf16.mxu0 0
    %91 = vmatpush1.bf16.msra.mxu0 0
    %92 = vmatprep.subr.bf16.mxu0 0
    %93 = vmatpush1.bf16.msra.mxu0 0
    %94 = vmatprep.subr.bf16.mxu0 0
    %95 = vmatpush1.bf16.msra.mxu0 0
    %96 = vmatprep.subr.bf16.mxu0 0
    %97 = vmatpush1.bf16.msra.mxu0 0
    %98 = vmatprep.subr.bf16.mxu0 0
    %99 = vmatpush1.bf16.msra.mxu0 0
    %100 = vmatprep.subr.bf16.mxu0 0
    %101 = vmatpush1.bf16.msra.mxu0 0
    %102 = vmatprep.subr.bf16.mxu0 0
    %103 = vmatpush1.bf16.msra.mxu0 0
    %104 = vmatprep.subr.bf16.mxu0 0
    %105 = vmatpush1.bf16.msra.mxu0 0
    %106 = vmatprep.subr.bf16.mxu0 0
    %107 = vmatpush1.bf16.msra.mxu0 0
    %108 = vmatprep.subr.bf16.mxu0 0
    %109 = vmatpush1.bf16.msra.mxu0 0
    %110 = vmatprep.subr.bf16.mxu0 0
    %111 = vmatpush1.bf16.msra.mxu0 0
    %112 = vmatprep.mubr.bf16.mxu0 0
    %113 = vmatmul.mubr.bf16.gmra.mrb[0].mxu0 %v69
    %v114 = vpop.f32.mrb[0].mxu0
    %v115 = vadd.f32 %v33, %v114
    %v116 = vpop.f32.mrb[0].mxu0
    %v117 = vpop.f32.mrb[0].mxu0
    %v118 = vadd.f32 %v33, %v117
    %v119 = vpop.f32.mrb[0].mxu0
    %120 = vmatprep.mubr.bf16.mxu0 0
    %121 = vmatmul.mubr.bf16.gmra.mrb[0].mxu0 %v72
    %v122 = vpop.f32.mrb[0].mxu0
    %v123 = vadd.f32 %v33, %v122
    %v124 = vpop.f32.mrb[0].mxu0
    %v125 = vpop.f32.mrb[0].mxu0
    %v126 = vadd.f32 %v33, %v125
    %v127 = vpop.f32.mrb[0].mxu0
    %128 = vmatprep.mubr.bf16.mxu0 0
    %129 = vmatmul.mubr.bf16.gmra.mrb[0].mxu0 %v75
    %v130 = vpop.f32.mrb[0].mxu0
    %v131 = vadd.f32 %v33, %v130
    %v132 = vpop.f32.mrb[0].mxu0
    %v133 = vpop.f32.mrb[0].mxu0
    %v134 = vadd.f32 %v33, %v133
    %v135 = vpop.f32.mrb[0].mxu0
    %136 = vmatprep.mubr.bf16.mxu0 0
    %137 = vmatmul.mubr.bf16.gmra.mrb[0].mxu0 %v78
    %v138 = vpop.f32.mrb[0].mxu0
    %v139 = vadd.f32 %v33, %v138
    %v140 = vpop.f32.mrb[0].mxu0
    %v141 = vpop.f32.mrb[0].mxu0
    %v142 = vadd.f32 %v33, %v141
    %v143 = vpop.f32.mrb[0].mxu0
    %144 = vdwg.mxu0
    %s145 = smul.u32 0, 64
    %v146 = vlaneseq
    %v147 = vshrl.u32 %v146, 7
    %v148 = vadd.s32 %v147, 8
    %v149 = vadd.s32 %v147, 16
    %v150 = vadd.s32 %v147, 24
    %v151 = vadd.s32 %v147, 32
    %v152 = vadd.s32 %v147, 40
    %v153 = vadd.s32 %v147, 48
    %v154 = vadd.s32 %v147, 56
    %v155 = vstv %s145
    %v156 = vadd.s32 %v155, %v147
    %v157 = vadd.s32 %v155, %v148
    %v158 = vadd.s32 %v155, %v149
    %v159 = vadd.s32 %v155, %v150
    %v160 = vadd.s32 %v155, %v151
    %v161 = vadd.s32 %v155, %v152
    %v162 = vadd.s32 %v155, %v153
    %v163 = vadd.s32 %v155, %v154
    %vm164 = vcmp.lt.s32.totalorder %v156, 8
    %vm165 = vcmp.lt.s32.totalorder %v157, 8
    %vm166 = vcmp.lt.s32.totalorder %v158, 8
    %vm167 = vcmp.lt.s32.totalorder %v159, 8
    %vm168 = vcmp.lt.s32.totalorder %v160, 8
    %vm169 = vcmp.lt.s32.totalorder %v161, 8
    %vm170 = vcmp.lt.s32.totalorder %v162, 8
    %vm171 = vcmp.lt.s32.totalorder %v163, 8
    %v172 = vsel %vm164, 0.0, %v115
    %v173 = vsel %vm165, 0.0, %v118
    %v174 = vsel %vm166, 0.0, %v123
    %v175 = vsel %vm167, 0.0, %v126
    %v176 = vsel %vm168, 0.0, %v131
    %v177 = vsel %vm169, 0.0, %v134
    %v178 = vsel %vm170, 0.0, %v139
    %v179 = vsel %vm171, 0.0, %v142
    %vm180 = vcmask 130048
    %181 = vst.msk [vmem:[#allocation2] sm:$0xff] %vm180, %v172
    %182 = vst.msk [vmem:[#allocation2 + $0x8] sm:$0xff] %vm180, %v173
    %183 = vst.msk [vmem:[#allocation2 + $0x10] sm:$0xff] %vm180, %v174
    %184 = vst.msk [vmem:[#allocation2 + $0x18] sm:$0xff] %vm180, %v175
    %185 = vst.msk [vmem:[#allocation2 + $0x20] sm:$0xff] %vm180, %v176
    %186 = vst.msk [vmem:[#allocation2 + $0x28] sm:$0xff] %vm180, %v177
    %187 = vst.msk [vmem:[#allocation2 + $0x30] sm:$0xff] %vm180, %v178
    %188 = vst.msk [vmem:[#allocation2 + $0x38] sm:$0xff] %vm180, %v179
    // Predicated region
    $region14: #{seq2seq_forward.9} parent=1 // pred_check
      _
    $region15: #{seq2seq_forward.9} parent=1 // pred_check_branch
      %190 = sbr.rel (0) target = $region17
    $region16: #{seq2seq_forward.9} parent=1 // pred_region
      %s192 = ssub.s32 1024, 1024
      %193 = vsyncadd [#allocation3], %s192
      %s194 = sshll.u32 [#allocation2], 4
      %s195 = int_to_ptr.vmem [resolvable:$true] %s194
      %200 = dma.vmem_to_hbm [thread:$0]  %s195, 1024, %s3, [#allocation3], 128, 128, 8
    $region17: #{seq2seq_forward.9} parent=1 // pred_fallthru
      _
    // Predicated region
    $region18: #{seq2seq_forward.9} parent=1 // pred_check
      _
    $region19: #{seq2seq_forward.9} parent=1 // pred_check_branch
      %202 = sbr.rel (0) target = $region21
    $region20: #{seq2seq_forward.9} parent=1 // pred_region
      %203 = dma.done [#allocation3], 1024
    $region21: #{seq2seq_forward.9} parent=1 // pred_fallthru
      _
    %204 = vsyncpa [#allocation3], 1

</llo_original>
